<compile_context>
chip_gen: v7x
topology: tpu7x:2x2x1
jax: 0.10.0
libtpu: 0.0.40
codegen_flags: <defaults>
</compile_context>

<pallas_src>
import functools

import numpy as np

import jax
import jax.numpy as jnp
from jax.experimental import pallas as pl
from jax.experimental.pallas import tpu as pltpu


# ------------------------------ small helpers ------------------------------

def _round_up(a, b):
    return (a + b - 1) // b * b


def _erf(x):
    # Abramowitz & Stegun 7.1.26 (|abs err| < 1.5e-7 vs exact erf); the
    # 1/(1+p|x|) term uses the EUP reciprocal slot (approx=True).
    a1, a2, a3, a4, a5 = 0.254829592, -0.284496736, 1.421413741, -1.453152027, 1.061405429
    p = 0.3275911
    ax = jnp.abs(x)
    t = pl.reciprocal(1.0 + p * ax, approx=True)
    poly = ((((a5 * t + a4) * t + a3) * t + a2) * t + a1) * t
    y = 1.0 - poly * jnp.exp(-ax * ax)
    return jnp.where(x >= 0.0, y, -y)


def _gelu(x):
    # exact-form GELU (nn.GELU default): 0.5 * x * (1 + erf(x / sqrt(2)))
    return 0.5 * x * (1.0 + _erf(x * 0.7071067811865476))


@functools.lru_cache(maxsize=1)
def _pltpu_roll_sign():
    """Self-calibrate pltpu.roll's shift convention against jnp.roll.

    Returns -1 if pltpu.roll(x, s) == jnp.roll(x, s)   (tap shift = (-d) % L)
            +1 if pltpu.roll(x, s) == jnp.roll(x, -s)  (tap shift = (+d) % L)
             0 -> fall back to jnp.roll inside the kernel.
    """
    x = jnp.arange(8 * 128, dtype=jnp.float32).reshape(8, 128)

    def probe(x_ref, o_ref):
        o_ref[...] = pltpu.roll(x_ref[...], 3, axis=1)

    try:
        y = pl.pallas_call(
            probe, out_shape=jax.ShapeDtypeStruct((8, 128), jnp.float32))(x)
        if bool(jnp.array_equal(y, jnp.roll(x, 3, axis=1))):
            return -1
        if bool(jnp.array_equal(y, jnp.roll(x, -3, axis=1))):
            return 1
    except Exception:
        pass
    return 0


# --------------------------------- kernel ----------------------------------

def efm_kernel(z_ref, x_ref, mask_ref, pool_ref, bcast_ref, se_w_ref, p_ref,
               wstack_ref, bup_ref, weff_ref, ceff_ref, o_ref, corr_scr, *,
               W, HWp, Bt, roll_sign):
    NK = z_ref.shape[1]
    L = Bt * HWp

    # ---- packed per-NK params (static slices) ----
    p = p_ref[...]                                    # (NK, 12)
    w_self, b_self = p[:, 0:1], p[:, 1:2]             # identity+conv11+3x3 center
    w33_off = p[:, 2:10]                              # 8 off-center 3x3 taps
    se_b1, se_b2 = p[:, 10:11], p[:, 11:12]
    se_w1 = se_w_ref[0:NK, :]
    se_w2 = se_w_ref[NK:2 * NK, :]

    # ---- per-batch pixel-wise correlation into lane-aligned scratch blocks ----
    def corr_block(bi, off):
        xb = x_ref[:, pl.ds(off, HWp)].astype(jnp.bfloat16)        # (C, HWp)
        zb = z_ref[bi].astype(jnp.bfloat16)                        # (NK, C)
        corr_scr[:, pl.ds(off, HWp)] = jnp.dot(
            zb, xb, preferred_element_type=jnp.float32)

    if Bt <= 8:
        for bi in range(Bt):
            corr_block(bi, bi * HWp)                               # static offsets
    else:
        def body(bi, carry):
            corr_block(bi, pl.multiple_of(bi * HWp, 128))
            return carry
        jax.lax.fori_loop(0, Bt, body, 0)

    corr_u = corr_scr[...]                                         # (NK, L), un-gated

    # ---- SE gate, batched over the Bt batches of this step ----
    # pooled[:, b] == mean_HW(corr_b) via one matmul with a block-mean matrix
    # (padded lanes carry weight 0), then two (NK, Bt) matmuls and one
    # (NK, L) broadcast multiply built from a 0/1 block matrix.
    pooled = jnp.dot(corr_u, pool_ref[...],
                     preferred_element_type=jnp.float32)           # (NK, Bt)
    h1 = jnp.maximum(
        jnp.dot(se_w1, pooled, preferred_element_type=jnp.float32) + se_b1, 0.0)
    gate = jax.nn.sigmoid(
        jnp.dot(se_w2, h1, preferred_element_type=jnp.float32) + se_b2)  # (NK, Bt)
    gate_full = jnp.dot(gate, bcast_ref[...],
                        preferred_element_type=jnp.float32)        # (NK, L)
    corr = corr_u * gate_full                                      # SE-gated corr

    # ---- identity + depthwise 1x1 + depthwise 3x3 (BN folded) ----
    # center tap / conv11 / identity are pre-folded into (w_self, b_self);
    # boundary handling uses 8 precomputed per-tap masks (constant input).
    # Valid taps never cross a per-batch block (source stays in [0, HW-1]);
    # invalid / cross-block taps are zeroed by the masks.
    masks = mask_ref[...]                                          # (8, L)
    mix = w_self * corr + b_self
    j = 0
    for ky in (-1, 0, 1):
        for kx in (-1, 0, 1):
            if ky == 0 and kx == 0:
                continue
            d = ky * W + kx
            if roll_sign == 0:
                tap = jnp.roll(corr, -d, axis=1)
            else:
                tap = pltpu.roll(corr, (roll_sign * d) % L, axis=1)
            mix = mix + w33_off[:, j:j + 1] * (tap * masks[j:j + 1, :])
            j += 1

    # ---- fused bottleneck + adjust + residual ----
    #   out = Wadj@mix + (Wadj@Wdn')@gelu(Wup'@mix + bup') + c_eff + x
    stacked = jnp.dot(wstack_ref[...], mix.astype(jnp.bfloat16),
                      preferred_element_type=jnp.float32)          # (2NK+C, L)
    up = stacked[0:2 * NK, :] + bup_ref[...]
    adj = stacked[2 * NK:, :]
    act = _gelu(up)
    dn_adj = jnp.dot(weff_ref[...], act.astype(jnp.bfloat16),
                     preferred_element_type=jnp.float32)           # (C, L)
    o_ref[...] = (adj + dn_adj + ceff_ref[...] + x_ref[...]).astype(o_ref.dtype)


# --------------------------- tiling / VMEM policy ---------------------------

def _step_vmem_bytes(bt, NK, C, HWp):
    L = bt * HWp
    zb = bt * NK * C * 4
    xb = C * L * 4
    ob = C * L * 4
    tables = (8 + 2 * bt) * L * 4            # masks + pool / broadcast matrices
    scratch = NK * L * 4
    temps = 8 * (2 * NK + C) * L * 4         # stacked / up / act / adj / tap slabs
    return 2 * (zb + xb + ob + tables) + scratch + temps


def _vmem_policy():
    """Generation-aware VMEM budget: small on v7x (64 MiB VMEM, 2 TCs, force
    >=2 grid steps), large on v5e/v6e (128 MiB VMEM), conservative otherwise."""
    kind = ""
    try:
        kind = jax.devices()[0].device_kind.lower()
    except Exception:
        pass
    vmem_cap = None
    try:
        info = pltpu.get_tpu_info()
        vmem_cap = getattr(info, "vmem_capacity_bytes", None)
    except Exception:
        vmem_cap = None

    small_vmem = vmem_cap is not None and vmem_cap <= 80 * 2 ** 20
    if "v7" in kind or "tpu7" in kind or small_vmem:
        return dict(budget=18 * 2 ** 20, limit_cap=36 * 2 ** 20, force_multistep=True)
    if "v5" in kind or "v6" in kind or (vmem_cap is not None and vmem_cap >= 100 * 2 ** 20):
        return dict(budget=72 * 2 ** 20, limit_cap=100 * 2 ** 20, force_multistep=False)
    return dict(budget=18 * 2 ** 20, limit_cap=32 * 2 ** 20, force_multistep=False)


def _choose_bt(B, NK, C, HWp, vmem_budget_bytes, force_multistep):
    """Pick batches-per-step: fits the budget, on v7x prefers >=2 grid steps
    (both TensorCores fed), prefers >=256 lanes per step, then the largest bt."""
    best = None
    for bt in range(1, B + 1):
        if B % bt:
            continue
        fits = _step_vmem_bytes(bt, NK, C, HWp) <= vmem_budget_bytes
        if not fits and bt > 1:
            continue
        nsteps = B // bt
        multi_ok = (not force_multistep) or (nsteps >= 2) or (B == 1)
        key = (1 if multi_ok else 0, 1 if bt * HWp >= 256 else 0, bt)
        if best is None or key > best[0]:
            best = (key, bt)
    return best[1]


def _make_lane_tables(H, W, HWp, bt):
    """Per-tap boundary masks (8, L), block-mean matrix (L, bt), and 0/1
    block-broadcast matrix (bt, L) for the padded per-batch lane layout."""
    HW = H * W
    L = bt * HWp
    m = np.zeros((8, HWp), np.float32)
    s = np.arange(HW)
    r, c = s // W, s % W
    j = 0
    for ky in (-1, 0, 1):
        for kx in (-1, 0, 1):
            if ky == 0 and kx == 0:
                continue
            valid = np.ones(HW, bool)
            if ky == -1:
                valid &= r >= 1
            if ky == 1:
                valid &= r <= H - 2
            if kx == -1:
                valid &= c >= 1
            if kx == 1:
                valid &= c <= W - 2
            m[j, :HW] = valid
            j += 1
    masks = np.tile(m, (1, bt))                                    # (8, L)

    blk = np.zeros((bt, L), np.float32)
    for b in range(bt):
        blk[b, b * HWp:b * HWp + HW] = 1.0                         # real lanes only
    pool_mat = (blk / HW).T                                        # (L, bt)
    return jnp.asarray(masks), jnp.asarray(pool_mat), jnp.asarray(blk)


# --------------------------------- wrapper ----------------------------------

def efm_forward(z, x, params, *, bt=None):
    B, C, HZ, WZ = z.shape
    _, _, H, W = x.shape
    NK = HZ * WZ
    HW = H * W
    HWp = _round_up(HW, 128)                 # lane-aligned per-batch stride
    se_w, p_nk, w_stack, bup, w_eff, c_eff = params

    policy = _vmem_policy()
    if bt is None:
        bt = _choose_bt(B, NK, C, HWp, policy["budget"], policy["force_multistep"])
    assert B % bt == 0
    L = bt * HWp
    n_steps = B // bt

    # glue: NCHW -> lane-aligned slabs.  x/out use a (C, B*HWp) layout so each
    # grid step loads/stores a lane-dense (C, bt*HWp) block; per-batch pixels
    # are zero-padded from HW to HWp lanes.
    z_t = z.reshape(B, C, NK).transpose(0, 2, 1)                   # (B, NK, C)
    x_flat = x.reshape(B, C, HW)
    if HWp != HW:
        x_flat = jnp.pad(x_flat, ((0, 0), (0, 0), (0, HWp - HW)))
    x_slab = x_flat.transpose(1, 0, 2).reshape(C, B * HWp)

    masks, pool_mat, bcast_mat = _make_lane_tables(H, W, HWp, bt)
    roll_sign = _pltpu_roll_sign()

    def const(shape):
        n = len(shape)
        return pl.BlockSpec(shape, lambda g, n=n: (0,) * n)

    param_bytes = sum(int(a.size) * a.dtype.itemsize for a in params)
    param_bytes += int(masks.size + pool_mat.size + bcast_mat.size) * 4
    vmem_limit = int(min(max(2 * (_step_vmem_bytes(bt, NK, C, HWp) + param_bytes),
                             16 * 2 ** 20), policy["limit_cap"]))

    # constants are tiny (<1 MiB here) so default double-buffering is a
    # negligible VMEM cost; pl.Buffered(1) intentionally not used.
    out = pl.pallas_call(
        functools.partial(efm_kernel, W=W, HWp=HWp, Bt=bt, roll_sign=roll_sign),
        out_shape=jax.ShapeDtypeStruct((C, B * HWp), jnp.float32),
        grid=(n_steps,),
        in_specs=[
            pl.BlockSpec((bt, NK, C), lambda g: (g, 0, 0)),
            pl.BlockSpec((C, L), lambda g: (0, g)),
            const(masks.shape), const(pool_mat.shape), const(bcast_mat.shape),
            const(se_w.shape), const(p_nk.shape), const(w_stack.shape),
            const(bup.shape), const(w_eff.shape), const(c_eff.shape),
        ],
        out_specs=pl.BlockSpec((C, L), lambda g: (0, g)),
        scratch_shapes=[pltpu.VMEM((NK, L), jnp.float32)],
        compiler_params=pltpu.CompilerParams(
            dimension_semantics=("parallel",),
            vmem_limit_bytes=vmem_limit),
    )(z_t, x_slab, masks, pool_mat, bcast_mat,
      se_w, p_nk, w_stack, bup, w_eff, c_eff)

    out = out.reshape(C, B, HWp)[:, :, :HW]
    return out.transpose(1, 0, 2).reshape(B, C, H, W)


# --------------------------- parameter preparation ---------------------------

def _bn_fold(gamma, beta, mean, var, eps=1e-5):
    s = gamma / jnp.sqrt(var + eps)
    return s, beta - mean * s


def fold_params(raw):
    """Fold eval-mode BN affines into conv weights, fuse the bottleneck's
    down-projection into the adjust conv, and pack small per-channel params."""
    s11, t11 = _bn_fold(*raw["bn11"])
    s33, t33 = _bn_fold(*raw["bn33"])
    sup, tup = _bn_fold(*raw["bn_up"])
    sdn, tdn = _bn_fold(*raw["bn_down"])

    w11 = s11 * raw["conv11_w"][:, 0]
    b11 = s11 * raw["conv11_b"] + t11
    w33 = s33[:, None] * raw["conv33_w"]          # (nk, 9), row-major (ky, kx)
    b33 = s33 * raw["conv33_b"] + t33

    w_self = 1.0 + w11 + w33[:, 4]                # identity + conv11 + center tap
    b_self = b11 + b33
    w33_off = w33[:, [0, 1, 2, 3, 5, 6, 7, 8]]    # 8 off-center taps

    p_nk = jnp.concatenate(
        [w_self[:, None], b_self[:, None], w33_off,
         raw["se_b1"][:, None], raw["se_b2"][:, None]], axis=1)   # (nk, 12)

    wup = sup[:, None] * raw["conv_up_w"]         # (2nk, nk)
    bup = sup * raw["conv_up_b"] + tup            # (2nk,)
    wdn = sdn[:, None] * raw["conv_down_w"]       # (nk, 2nk)
    bdn = sdn * raw["conv_down_b"] + tdn          # (nk,)

    wadj, badj = raw["adjust_w"], raw["adjust_b"]
    w_eff = wadj @ wdn                            # (c, 2nk) = Wadj @ Wdn'
    c_eff = wadj @ bdn + badj                     # (c,)
    w_stack = jnp.concatenate([wup, wadj], axis=0)                # (2nk+c, nk)
    se_w = jnp.concatenate([raw["se_w1"], raw["se_w2"]], axis=0)  # (2nk, nk)

    return (se_w.astype(jnp.float32),
            p_nk.astype(jnp.float32),
            w_stack.astype(jnp.bfloat16),          # MXU operand
            bup[:, None].astype(jnp.float32),
            w_eff.astype(jnp.bfloat16),            # MXU operand
            c_eff[:, None].astype(jnp.float32))


def init_raw_params(key, nk, c):
    ks = iter(jax.random.split(key, 32))
    nrm = lambda shape, sc=0.1: sc * jax.random.normal(next(ks), shape, jnp.float32)

    def bn(ch):
        gamma = 1.0 + 0.1 * jax.random.normal(next(ks), (ch,), jnp.float32)
        beta = 0.1 * jax.random.normal(next(ks), (ch,), jnp.float32)
        mean = 0.1 * jax.random.normal(next(ks), (ch,), jnp.float32)
        var = 0.5 + jax.random.uniform(next(ks), (ch,), jnp.float32)
        return (gamma, beta, mean, var)

    return {
        "se_w1": nrm((nk, nk)), "se_b1": nrm((nk,)),
        "se_w2": nrm((nk, nk)), "se_b2": nrm((nk,)),
        "conv11_w": nrm((nk, 1)), "conv11_b": nrm((nk,)), "bn11": bn(nk),
        "conv33_w": nrm((nk, 9)), "conv33_b": nrm((nk,)), "bn33": bn(nk),
        "conv_up_w": nrm((2 * nk, nk)), "conv_up_b": nrm((2 * nk,)), "bn_up": bn(2 * nk),
        "conv_down_w": nrm((nk, 2 * nk)), "conv_down_b": nrm((nk,)), "bn_down": bn(nk),
        "adjust_w": nrm((c, nk)), "adjust_b": nrm((c,)),
    }


# ----------------------- pure-JAX reference (f32, eval BN) -------------------

def efm_reference(z, x, raw, eps=1e-5):
    B, C, HZ, WZ = z.shape
    _, _, H, W = x.shape
    NK = HZ * WZ
    z_mat = z.reshape(B, C, NK).transpose(0, 2, 1)                  # (B, NK, C)
    x_mat = x.reshape(B, C, H * W)                                  # (B, C, HW)
    corr = jnp.einsum('bnc,bcl->bnl', z_mat, x_mat).reshape(B, NK, H, W)

    pooled = corr.mean(axis=(2, 3))                                 # (B, NK)
    h1 = jax.nn.relu(pooled @ raw["se_w1"].T + raw["se_b1"])
    gate = jax.nn.sigmoid(h1 @ raw["se_w2"].T + raw["se_b2"])
    corr = corr * gate[:, :, None, None]

    def bn(y, p):
        g, b, m, v = p
        s = (g / jnp.sqrt(v + eps)).reshape(1, -1, 1, 1)
        return s * (y - m.reshape(1, -1, 1, 1)) + b.reshape(1, -1, 1, 1)

    y11 = bn(corr * raw["conv11_w"][:, 0].reshape(1, NK, 1, 1)
             + raw["conv11_b"].reshape(1, NK, 1, 1), raw["bn11"])
    xp = jnp.pad(corr, ((0, 0), (0, 0), (1, 1), (1, 1)))
    w33 = raw["conv33_w"].reshape(NK, 3, 3)
    y33 = raw["conv33_b"].reshape(1, NK, 1, 1) * jnp.ones_like(corr)
    for i in range(3):
        for j in range(3):
            y33 = y33 + w33[:, i, j].reshape(1, NK, 1, 1) * xp[:, :, i:i + H, j:j + W]
    y33 = bn(y33, raw["bn33"])
    mix = corr + y11 + y33

    up = jnp.einsum('on,bnhw->bohw', raw["conv_up_w"], mix) \
        + raw["conv_up_b"].reshape(1, -1, 1, 1)
    act = jax.nn.gelu(bn(up, raw["bn_up"]), approximate=False)
    dn = jnp.einsum('no,bohw->bnhw', raw["conv_down_w"], act) \
        + raw["conv_down_b"].reshape(1, -1, 1, 1)
    mix = mix + bn(dn, raw["bn_down"])

    out = jnp.einsum('cn,bnhw->bchw', raw["adjust_w"], mix) \
        + raw["adjust_b"].reshape(1, -1, 1, 1)
    return out + x


# ----------------------------------- main ------------------------------------

if __name__ == "__main__":
    # small shapes consistent with the module:
    #   num_kernel = HZ*WZ = 16, adj_channel = C = 32 (so `corr + x` is valid)
    B, C = 4, 32
    HZ = WZ = 4          # template spatial -> NK = 16
    H = W = 8            # search spatial   -> HW = 64, padded to 128 lanes/batch

    key = jax.random.PRNGKey(0)
    kz, kx, kp = jax.random.split(key, 3)
    z = jax.random.normal(kz, (B, C, HZ, WZ), jnp.float32)
    x = jax.random.normal(kx, (B, C, H, W), jnp.float32)
    raw = init_raw_params(kp, HZ * WZ, C)
    params = fold_params(raw)

    out = efm_forward(z, x, params)
    jax.block_until_ready(out)
    assert out.shape == (B, C, H, W) and out.dtype == jnp.float32

    # sanity check against a pure-JAX f32 eval-mode reference; tolerance covers
    # the kernel's intentional bf16 MXU operands + erf-polynomial GELU.
    ref = efm_reference(z, x, raw)
    err = float(jnp.max(jnp.abs(out - ref)))
    scale = float(jnp.max(jnp.abs(ref))) + 1e-6
    assert err <= 0.05 * scale + 0.3, f"kernel/reference mismatch: {err} (scale {scale})"
    print("KERNEL_OK")
</pallas_src>

<mosaic_0001>
module attributes {stable_mosaic.version = 11 : i64} {
  func.func @probe(%arg0: memref<8x128xf32, #tpu.memory_space<vmem>>, %arg1: memref<8x128xf32, #tpu.memory_space<vmem>>) attributes {dimension_semantics = [], scalar_prefetch = 0 : i64, scratch_operands = 0 : i64, tpu.core_type = #tpu.core_type<tc>} {
    %c0 = arith.constant 0 : index
    %c0_0 = arith.constant 0 : index
    %0 = vector.load %arg0[%c0, %c0_0] : memref<8x128xf32, #tpu.memory_space<vmem>>, vector<8x128xf32>
    %c3_i32 = arith.constant 3 : i32
    %1 = tpu.dynamic_rotate %0 by %c3_i32 dim 1 : vector<8x128xf32>, i32 -> vector<8x128xf32>
    %c0_1 = arith.constant 0 : index
    %c0_2 = arith.constant 0 : index
    %2 = vector.load %arg1[%c0_1, %c0_2] : memref<8x128xf32, #tpu.memory_space<vmem>>, vector<8x128xf32>
    tpu.vector_store %arg1[%c0_1, %c0_2], %1 {strides = array<i32>} : memref<8x128xf32, #tpu.memory_space<vmem>>, vector<8x128xf32>,
    return
  }
}

module attributes {stable_mosaic.version = 11 : i64} {
  func.func @efm_kernel(%arg0: i32, %arg1: memref<4x16x32xf32, #tpu.memory_space<vmem>>, %arg2: memref<32x512xf32, #tpu.memory_space<vmem>>, %arg3: memref<8x512xf32, #tpu.memory_space<vmem>>, %arg4: memref<512x4xf32, #tpu.memory_space<vmem>>, %arg5: memref<4x512xf32, #tpu.memory_space<vmem>>, %arg6: memref<32x16xf32, #tpu.memory_space<vmem>>, %arg7: memref<16x12xf32, #tpu.memory_space<vmem>>, %arg8: memref<64x16xbf16, #tpu.memory_space<vmem>>, %arg9: memref<32x1xf32, #tpu.memory_space<vmem>>, %arg10: memref<32x32xbf16, #tpu.memory_space<vmem>>, %arg11: memref<32x1xf32, #tpu.memory_space<vmem>>, %arg12: memref<32x512xf32, #tpu.memory_space<vmem>>, %arg13: memref<16x512xf32, #tpu.memory_space<vmem>>) attributes {dimension_semantics = [#tpu.dimension_semantics<parallel>], iteration_bounds = array<i64: 1>, scalar_prefetch = 0 : i64, scratch_operands = 1 : i64, tpu.core_type = #tpu.core_type<tc>, window_params = [{transform_indices = @transform_0, window_bounds = array<i64: 4, 16, 32>}, {transform_indices = @transform_1, window_bounds = array<i64: 32, 512>}, {pipeline_mode = #tpu.pipeline_mode<synchronous>, transform_indices = @transform_2, window_bounds = array<i64: 8, 512>}, {pipeline_mode = #tpu.pipeline_mode<synchronous>, transform_indices = @transform_3, window_bounds = array<i64: 512, 4>}, {pipeline_mode = #tpu.pipeline_mode<synchronous>, transform_indices = @transform_4, window_bounds = array<i64: 4, 512>}, {pipeline_mode = #tpu.pipeline_mode<synchronous>, transform_indices = @transform_5, window_bounds = array<i64: 32, 16>}, {pipeline_mode = #tpu.pipeline_mode<synchronous>, transform_indices = @transform_6, window_bounds = array<i64: 16, 12>}, {pipeline_mode = #tpu.pipeline_mode<synchronous>, transform_indices = @transform_7, window_bounds = array<i64: 64, 16>}, {pipeline_mode = #tpu.pipeline_mode<synchronous>, transform_indices = @transform_8, window_bounds = array<i64: 32, 1>}, {pipeline_mode = #tpu.pipeline_mode<synchronous>, transform_indices = @transform_9, window_bounds = array<i64: 32, 32>}, {pipeline_mode = #tpu.pipeline_mode<synchronous>, transform_indices = @transform_10, window_bounds = array<i64: 32, 1>}, {transform_indices = @transform_11, window_bounds = array<i64: 32, 512>}]} {
    %c0 = arith.constant 0 : index
    %c0_0 = arith.constant 0 : index
    %0 = vector.load %arg7[%c0, %c0_0] : memref<16x12xf32, #tpu.memory_space<vmem>>, vector<16x12xf32>
    %1 = vector.extract_strided_slice %0 {offsets = [0, 0], sizes = [16, 1], strides = [1, 1]} : vector<16x12xf32> to vector<16x1xf32>
    %2 = vector.extract_strided_slice %0 {offsets = [0, 1], sizes = [16, 1], strides = [1, 1]} : vector<16x12xf32> to vector<16x1xf32>
    %3 = vector.extract_strided_slice %0 {offsets = [0, 2], sizes = [16, 8], strides = [1, 1]} : vector<16x12xf32> to vector<16x8xf32>
    %4 = vector.extract_strided_slice %0 {offsets = [0, 10], sizes = [16, 1], strides = [1, 1]} : vector<16x12xf32> to vector<16x1xf32>
    %5 = vector.extract_strided_slice %0 {offsets = [0, 11], sizes = [16, 1], strides = [1, 1]} : vector<16x12xf32> to vector<16x1xf32>
    %c0_1 = arith.constant 0 : index
    %c0_2 = arith.constant 0 : index
    %6 = vector.load %arg6[%c0_1, %c0_2] : memref<32x16xf32, #tpu.memory_space<vmem>>, vector<16x16xf32>
    %c16 = arith.constant 16 : index
    %c0_3 = arith.constant 0 : index
    %7 = vector.load %arg6[%c16, %c0_3] : memref<32x16xf32, #tpu.memory_space<vmem>>, vector<16x16xf32>
    %c0_4 = arith.constant 0 : index
    %c0_5 = arith.constant 0 : index
    %8 = vector.load %arg2[%c0_4, %c0_5] : memref<32x512xf32, #tpu.memory_space<vmem>>, vector<32x128xf32>
    %9 = arith.truncf %8 : vector<32x128xf32> to vector<32x128xbf16>
    %c0_6 = arith.constant 0 : index
    %c0_7 = arith.constant 0 : index
    %c0_8 = arith.constant 0 : index
    %10 = vector.load %arg1[%c0_6, %c0_7, %c0_8] : memref<4x16x32xf32, #tpu.memory_space<vmem>>, vector<1x16x32xf32>
    %11 = vector.shape_cast %10 : vector<1x16x32xf32> to vector<16x32xf32>
    %12 = arith.truncf %11 : vector<16x32xf32> to vector<16x32xbf16>
    %cst = arith.constant dense<0.000000e+00> : vector<16x128xf32>
    %13 = tpu.matmul %12, %9, %cst {dimension_numbers = #tpu.dot_dimension_numbers<[1], [0], [0], [1], [0, 0, 1, 1], [], []>} : vector<16x32xbf16>, vector<32x128xbf16>, vector<16x128xf32> -> vector<16x128xf32>
    %c0_9 = arith.constant 0 : index
    %c0_10 = arith.constant 0 : index
    %14 = vector.load %arg13[%c0_9, %c0_10] : memref<16x512xf32, #tpu.memory_space<vmem>>, vector<16x128xf32>
    tpu.vector_store %arg13[%c0_9, %c0_10], %13 {strides = array<i32>} : memref<16x512xf32, #tpu.memory_space<vmem>>, vector<16x128xf32>,
    %c0_11 = arith.constant 0 : index
    %c128 = arith.constant 128 : index
    %15 = vector.load %arg2[%c0_11, %c128] : memref<32x512xf32, #tpu.memory_space<vmem>>, vector<32x128xf32>
    %16 = arith.truncf %15 : vector<32x128xf32> to vector<32x128xbf16>
    %c1 = arith.constant 1 : index
    %c0_12 = arith.constant 0 : index
    %c0_13 = arith.constant 0 : index
    %17 = vector.load %arg1[%c1, %c0_12, %c0_13] : memref<4x16x32xf32, #tpu.memory_space<vmem>>, vector<1x16x32xf32>
    %18 = vector.shape_cast %17 : vector<1x16x32xf32> to vector<16x32xf32>
    %19 = arith.truncf %18 : vector<16x32xf32> to vector<16x32xbf16>
    %cst_14 = arith.constant dense<0.000000e+00> : vector<16x128xf32>
    %20 = tpu.matmul %19, %16, %cst_14 {dimension_numbers = #tpu.dot_dimension_numbers<[1], [0], [0], [1], [0, 0, 1, 1], [], []>} : vector<16x32xbf16>, vector<32x128xbf16>, vector<16x128xf32> -> vector<16x128xf32>
    %c0_15 = arith.constant 0 : index
    %c128_16 = arith.constant 128 : index
    %21 = vector.load %arg13[%c0_15, %c128_16] : memref<16x512xf32, #tpu.memory_space<vmem>>, vector<16x128xf32>
    tpu.vector_store %arg13[%c0_15, %c128_16], %20 {strides = array<i32>} : memref<16x512xf32, #tpu.memory_space<vmem>>, vector<16x128xf32>,
    %c0_17 = arith.constant 0 : index
    %c256 = arith.constant 256 : index
    %22 = vector.load %arg2[%c0_17, %c256] : memref<32x512xf32, #tpu.memory_space<vmem>>, vector<32x128xf32>
    %23 = arith.truncf %22 : vector<32x128xf32> to vector<32x128xbf16>
    %c2 = arith.constant 2 : index
    %c0_18 = arith.constant 0 : index
    %c0_19 = arith.constant 0 : index
    %24 = vector.load %arg1[%c2, %c0_18, %c0_19] : memref<4x16x32xf32, #tpu.memory_space<vmem>>, vector<1x16x32xf32>
    %25 = vector.shape_cast %24 : vector<1x16x32xf32> to vector<16x32xf32>
    %26 = arith.truncf %25 : vector<16x32xf32> to vector<16x32xbf16>
    %cst_20 = arith.constant dense<0.000000e+00> : vector<16x128xf32>
    %27 = tpu.matmul %26, %23, %cst_20 {dimension_numbers = #tpu.dot_dimension_numbers<[1], [0], [0], [1], [0, 0, 1, 1], [], []>} : vector<16x32xbf16>, vector<32x128xbf16>, vector<16x128xf32> -> vector<16x128xf32>
    %c0_21 = arith.constant 0 : index
    %c256_22 = arith.constant 256 : index
    %28 = vector.load %arg13[%c0_21, %c256_22] : memref<16x512xf32, #tpu.memory_space<vmem>>, vector<16x128xf32>
    tpu.vector_store %arg13[%c0_21, %c256_22], %27 {strides = array<i32>} : memref<16x512xf32, #tpu.memory_space<vmem>>, vector<16x128xf32>,
    %c0_23 = arith.constant 0 : index
    %c384 = arith.constant 384 : index
    %29 = vector.load %arg2[%c0_23, %c384] : memref<32x512xf32, #tpu.memory_space<vmem>>, vector<32x128xf32>
    %30 = arith.truncf %29 : vector<32x128xf32> to vector<32x128xbf16>
    %c3 = arith.constant 3 : index
    %c0_24 = arith.constant 0 : index
    %c0_25 = arith.constant 0 : index
    %31 = vector.load %arg1[%c3, %c0_24, %c0_25] : memref<4x16x32xf32, #tpu.memory_space<vmem>>, vector<1x16x32xf32>
    %32 = vector.shape_cast %31 : vector<1x16x32xf32> to vector<16x32xf32>
    %33 = arith.truncf %32 : vector<16x32xf32> to vector<16x32xbf16>
    %cst_26 = arith.constant dense<0.000000e+00> : vector<16x128xf32>
    %34 = tpu.matmul %33, %30, %cst_26 {dimension_numbers = #tpu.dot_dimension_numbers<[1], [0], [0], [1], [0, 0, 1, 1], [], []>} : vector<16x32xbf16>, vector<32x128xbf16>, vector<16x128xf32> -> vector<16x128xf32>
    %c0_27 = arith.constant 0 : index
    %c384_28 = arith.constant 384 : index
    %35 = vector.load %arg13[%c0_27, %c384_28] : memref<16x512xf32, #tpu.memory_space<vmem>>, vector<16x128xf32>
    tpu.vector_store %arg13[%c0_27, %c384_28], %34 {strides = array<i32>} : memref<16x512xf32, #tpu.memory_space<vmem>>, vector<16x128xf32>,
    %c0_29 = arith.constant 0 : index
    %c0_30 = arith.constant 0 : index
    %36 = vector.load %arg13[%c0_29, %c0_30] : memref<16x512xf32, #tpu.memory_space<vmem>>, vector<16x512xf32>
    %c0_31 = arith.constant 0 : index
    %c0_32 = arith.constant 0 : index
    %37 = vector.load %arg4[%c0_31, %c0_32] : memref<512x4xf32, #tpu.memory_space<vmem>>, vector<512x4xf32>
    %cst_33 = arith.constant dense<0.000000e+00> : vector<16x4xf32>
    %38 = tpu.matmul %36, %37, %cst_33 {dimension_numbers = #tpu.dot_dimension_numbers<[1], [0], [0], [1], [0, 0, 1, 1], [], []>} : vector<16x512xf32>, vector<512x4xf32>, vector<16x4xf32> -> vector<16x4xf32>
    %cst_34 = arith.constant dense<0.000000e+00> : vector<16x4xf32>
    %39 = tpu.matmul %6, %38, %cst_34 {dimension_numbers = #tpu.dot_dimension_numbers<[1], [0], [0], [1], [0, 0, 1, 1], [], []>} : vector<16x16xf32>, vector<16x4xf32>, vector<16x4xf32> -> vector<16x4xf32>
    %40 = vector.broadcast %4 : vector<16x1xf32> to vector<16x4xf32>
    %41 = arith.addf %39, %40 : vector<16x4xf32>
    %cst_35 = arith.constant 0.000000e+00 : f32
    %42 = vector.broadcast %cst_35 : f32 to vector<16x4xf32>
    %43 = arith.maximumf %41, %42 : vector<16x4xf32>
    %cst_36 = arith.constant dense<0.000000e+00> : vector<16x4xf32>
    %44 = tpu.matmul %7, %43, %cst_36 {dimension_numbers = #tpu.dot_dimension_numbers<[1], [0], [0], [1], [0, 0, 1, 1], [], []>} : vector<16x16xf32>, vector<16x4xf32>, vector<16x4xf32> -> vector<16x4xf32>
    %45 = vector.broadcast %5 : vector<16x1xf32> to vector<16x4xf32>
    %46 = arith.addf %44, %45 : vector<16x4xf32>
    %47 = arith.negf %46 : vector<16x4xf32>
    %48 = math.exp %47 : vector<16x4xf32>
    %cst_37 = arith.constant 1.000000e+00 : f32
    %49 = vector.broadcast %cst_37 : f32 to vector<16x4xf32>
    %50 = arith.addf %49, %48 : vector<16x4xf32>
    %51 = arith.divf %49, %50 : vector<16x4xf32>
    %c0_38 = arith.constant 0 : index
    %c0_39 = arith.constant 0 : index
    %52 = vector.load %arg5[%c0_38, %c0_39] : memref<4x512xf32, #tpu.memory_space<vmem>>, vector<4x512xf32>
    %cst_40 = arith.constant dense<0.000000e+00> : vector<16x512xf32>
    %53 = tpu.matmul %51, %52, %cst_40 {dimension_numbers = #tpu.dot_dimension_numbers<[1], [0], [0], [1], [0, 0, 1, 1], [], []>} : vector<16x4xf32>, vector<4x512xf32>, vector<16x512xf32> -> vector<16x512xf32>
    %54 = arith.mulf %36, %53 : vector<16x512xf32>
    %c0_41 = arith.constant 0 : index
    %c0_42 = arith.constant 0 : index
    %55 = vector.load %arg3[%c0_41, %c0_42] : memref<8x512xf32, #tpu.memory_space<vmem>>, vector<8x512xf32>
    %56 = vector.broadcast %1 : vector<16x1xf32> to vector<16x512xf32>
    %57 = arith.mulf %56, %54 : vector<16x512xf32>
    %58 = vector.broadcast %2 : vector<16x1xf32> to vector<16x512xf32>
    %59 = arith.addf %57, %58 : vector<16x512xf32>
    %60 = vector.extract_strided_slice %54 {offsets = [0, 503], sizes = [16, 9], strides = [1, 1]} : vector<16x512xf32> to vector<16x9xf32>
    %61 = vector.extract_strided_slice %54 {offsets = [0, 0], sizes = [16, 503], strides = [1, 1]} : vector<16x512xf32> to vector<16x503xf32>
    %62 = tpu.concatenate %60, %61 in 1 : vector<16x9xf32>, vector<16x503xf32> -> vector<16x512xf32>
    %63 = vector.extract_strided_slice %3 {offsets = [0, 0], sizes = [16, 1], strides = [1, 1]} : vector<16x8xf32> to vector<16x1xf32>
    %64 = vector.extract_strided_slice %55 {offsets = [0, 0], sizes = [1, 512], strides = [1, 1]} : vector<8x512xf32> to vector<1x512xf32>
    %65 = vector.broadcast %64 : vector<1x512xf32> to vector<16x512xf32>
    %66 = arith.mulf %62, %65 : vector<16x512xf32>
    %67 = vector.broadcast %63 : vector<16x1xf32> to vector<16x512xf32>
    %68 = arith.mulf %67, %66 : vector<16x512xf32>
    %69 = arith.addf %59, %68 : vector<16x512xf32>
    %70 = vector.extract_strided_slice %54 {offsets = [0, 504], sizes = [16, 8], strides = [1, 1]} : vector<16x512xf32> to vector<16x8xf32>
    %71 = vector.extract_strided_slice %54 {offsets = [0, 0], sizes = [16, 504], strides = [1, 1]} : vector<16x512xf32> to vector<16x504xf32>
    %72 = tpu.concatenate %70, %71 in 1 : vector<16x8xf32>, vector<16x504xf32> -> vector<16x512xf32>
    %73 = vector.extract_strided_slice %3 {offsets = [0, 1], sizes = [16, 1], strides = [1, 1]} : vector<16x8xf32> to vector<16x1xf32>
    %74 = vector.extract_strided_slice %55 {offsets = [1, 0], sizes = [1, 512], strides = [1, 1]} : vector<8x512xf32> to vector<1x512xf32>
    %75 = vector.broadcast %74 : vector<1x512xf32> to vector<16x512xf32>
    %76 = arith.mulf %72, %75 : vector<16x512xf32>
    %77 = vector.broadcast %73 : vector<16x1xf32> to vector<16x512xf32>
    %78 = arith.mulf %77, %76 : vector<16x512xf32>
    %79 = arith.addf %69, %78 : vector<16x512xf32>
    %80 = vector.extract_strided_slice %54 {offsets = [0, 505], sizes = [16, 7], strides = [1, 1]} : vector<16x512xf32> to vector<16x7xf32>
    %81 = vector.extract_strided_slice %54 {offsets = [0, 0], sizes = [16, 505], strides = [1, 1]} : vector<16x512xf32> to vector<16x505xf32>
    %82 = tpu.concatenate %80, %81 in 1 : vector<16x7xf32>, vector<16x505xf32> -> vector<16x512xf32>
    %83 = vector.extract_strided_slice %3 {offsets = [0, 2], sizes = [16, 1], strides = [1, 1]} : vector<16x8xf32> to vector<16x1xf32>
    %84 = vector.extract_strided_slice %55 {offsets = [2, 0], sizes = [1, 512], strides = [1, 1]} : vector<8x512xf32> to vector<1x512xf32>
    %85 = vector.broadcast %84 : vector<1x512xf32> to vector<16x512xf32>
    %86 = arith.mulf %82, %85 : vector<16x512xf32>
    %87 = vector.broadcast %83 : vector<16x1xf32> to vector<16x512xf32>
    %88 = arith.mulf %87, %86 : vector<16x512xf32>
    %89 = arith.addf %79, %88 : vector<16x512xf32>
    %90 = vector.extract_strided_slice %54 {offsets = [0, 511], sizes = [16, 1], strides = [1, 1]} : vector<16x512xf32> to vector<16x1xf32>
    %91 = vector.extract_strided_slice %54 {offsets = [0, 0], sizes = [16, 511], strides = [1, 1]} : vector<16x512xf32> to vector<16x511xf32>
    %92 = tpu.concatenate %90, %91 in 1 : vector<16x1xf32>, vector<16x511xf32> -> vector<16x512xf32>
    %93 = vector.extract_strided_slice %3 {offsets = [0, 3], sizes = [16, 1], strides = [1, 1]} : vector<16x8xf32> to vector<16x1xf32>
    %94 = vector.extract_strided_slice %55 {offsets = [3, 0], sizes = [1, 512], strides = [1, 1]} : vector<8x512xf32> to vector<1x512xf32>
    %95 = vector.broadcast %94 : vector<1x512xf32> to vector<16x512xf32>
    %96 = arith.mulf %92, %95 : vector<16x512xf32>
    %97 = vector.broadcast %93 : vector<16x1xf32> to vector<16x512xf32>
    %98 = arith.mulf %97, %96 : vector<16x512xf32>
    %99 = arith.addf %89, %98 : vector<16x512xf32>
    %100 = vector.extract_strided_slice %54 {offsets = [0, 1], sizes = [16, 511], strides = [1, 1]} : vector<16x512xf32> to vector<16x511xf32>
    %101 = vector.extract_strided_slice %54 {offsets = [0, 0], sizes = [16, 1], strides = [1, 1]} : vector<16x512xf32> to vector<16x1xf32>
    %102 = tpu.concatenate %100, %101 in 1 : vector<16x511xf32>, vector<16x1xf32> -> vector<16x512xf32>
    %103 = vector.extract_strided_slice %3 {offsets = [0, 4], sizes = [16, 1], strides = [1, 1]} : vector<16x8xf32> to vector<16x1xf32>
    %104 = vector.extract_strided_slice %55 {offsets = [4, 0], sizes = [1, 512], strides = [1, 1]} : vector<8x512xf32> to vector<1x512xf32>
    %105 = vector.broadcast %104 : vector<1x512xf32> to vector<16x512xf32>
    %106 = arith.mulf %102, %105 : vector<16x512xf32>
    %107 = vector.broadcast %103 : vector<16x1xf32> to vector<16x512xf32>
    %108 = arith.mulf %107, %106 : vector<16x512xf32>
    %109 = arith.addf %99, %108 : vector<16x512xf32>
    %110 = vector.extract_strided_slice %54 {offsets = [0, 7], sizes = [16, 505], strides = [1, 1]} : vector<16x512xf32> to vector<16x505xf32>
    %111 = vector.extract_strided_slice %54 {offsets = [0, 0], sizes = [16, 7], strides = [1, 1]} : vector<16x512xf32> to vector<16x7xf32>
    %112 = tpu.concatenate %110, %111 in 1 : vector<16x505xf32>, vector<16x7xf32> -> vector<16x512xf32>
    %113 = vector.extract_strided_slice %3 {offsets = [0, 5], sizes = [16, 1], strides = [1, 1]} : vector<16x8xf32> to vector<16x1xf32>
    %114 = vector.extract_strided_slice %55 {offsets = [5, 0], sizes = [1, 512], strides = [1, 1]} : vector<8x512xf32> to vector<1x512xf32>
    %115 = vector.broadcast %114 : vector<1x512xf32> to vector<16x512xf32>
    %116 = arith.mulf %112, %115 : vector<16x512xf32>
    %117 = vector.broadcast %113 : vector<16x1xf32> to vector<16x512xf32>
    %118 = arith.mulf %117, %116 : vector<16x512xf32>
    %119 = arith.addf %109, %118 : vector<16x512xf32>
    %120 = vector.extract_strided_slice %54 {offsets = [0, 8], sizes = [16, 504], strides = [1, 1]} : vector<16x512xf32> to vector<16x504xf32>
    %121 = vector.extract_strided_slice %54 {offsets = [0, 0], sizes = [16, 8], strides = [1, 1]} : vector<16x512xf32> to vector<16x8xf32>
    %122 = tpu.concatenate %120, %121 in 1 : vector<16x504xf32>, vector<16x8xf32> -> vector<16x512xf32>
    %123 = vector.extract_strided_slice %3 {offsets = [0, 6], sizes = [16, 1], strides = [1, 1]} : vector<16x8xf32> to vector<16x1xf32>
    %124 = vector.extract_strided_slice %55 {offsets = [6, 0], sizes = [1, 512], strides = [1, 1]} : vector<8x512xf32> to vector<1x512xf32>
    %125 = vector.broadcast %124 : vector<1x512xf32> to vector<16x512xf32>
    %126 = arith.mulf %122, %125 : vector<16x512xf32>
    %127 = vector.broadcast %123 : vector<16x1xf32> to vector<16x512xf32>
    %128 = arith.mulf %127, %126 : vector<16x512xf32>
    %129 = arith.addf %119, %128 : vector<16x512xf32>
    %130 = vector.extract_strided_slice %54 {offsets = [0, 9], sizes = [16, 503], strides = [1, 1]} : vector<16x512xf32> to vector<16x503xf32>
    %131 = vector.extract_strided_slice %54 {offsets = [0, 0], sizes = [16, 9], strides = [1, 1]} : vector<16x512xf32> to vector<16x9xf32>
    %132 = tpu.concatenate %130, %131 in 1 : vector<16x503xf32>, vector<16x9xf32> -> vector<16x512xf32>
    %133 = vector.extract_strided_slice %3 {offsets = [0, 7], sizes = [16, 1], strides = [1, 1]} : vector<16x8xf32> to vector<16x1xf32>
    %134 = vector.extract_strided_slice %55 {offsets = [7, 0], sizes = [1, 512], strides = [1, 1]} : vector<8x512xf32> to vector<1x512xf32>
    %135 = vector.broadcast %134 : vector<1x512xf32> to vector<16x512xf32>
    %136 = arith.mulf %132, %135 : vector<16x512xf32>
    %137 = vector.broadcast %133 : vector<16x1xf32> to vector<16x512xf32>
    %138 = arith.mulf %137, %136 : vector<16x512xf32>
    %139 = arith.addf %129, %138 : vector<16x512xf32>
    %c0_43 = arith.constant 0 : index
    %c0_44 = arith.constant 0 : index
    %140 = vector.load %arg8[%c0_43, %c0_44] : memref<64x16xbf16, #tpu.memory_space<vmem>>, vector<64x16xbf16>
    %141 = arith.truncf %139 : vector<16x512xf32> to vector<16x512xbf16>
    %cst_45 = arith.constant dense<0.000000e+00> : vector<64x512xf32>
    %142 = tpu.matmul %140, %141, %cst_45 {dimension_numbers = #tpu.dot_dimension_numbers<[1], [0], [0], [1], [0, 0, 1, 1], [], []>} : vector<64x16xbf16>, vector<16x512xbf16>, vector<64x512xf32> -> vector<64x512xf32>
    %143 = vector.extract_strided_slice %142 {offsets = [0, 0], sizes = [32, 512], strides = [1, 1]} : vector<64x512xf32> to vector<32x512xf32>
    %c0_46 = arith.constant 0 : index
    %c0_47 = arith.constant 0 : index
    %144 = vector.load %arg9[%c0_46, %c0_47] : memref<32x1xf32, #tpu.memory_space<vmem>>, vector<32x1xf32>
    %145 = vector.broadcast %144 : vector<32x1xf32> to vector<32x512xf32>
    %146 = arith.addf %143, %145 : vector<32x512xf32>
    %147 = vector.extract_strided_slice %142 {offsets = [32, 0], sizes = [32, 512], strides = [1, 1]} : vector<64x512xf32> to vector<32x512xf32>
    %cst_48 = arith.constant 5.000000e-01 : f32
    %148 = vector.broadcast %cst_48 : f32 to vector<32x512xf32>
    %149 = arith.mulf %148, %146 : vector<32x512xf32>
    %cst_49 = arith.constant 0.707106769 : f32
    %150 = vector.broadcast %cst_49 : f32 to vector<32x512xf32>
    %151 = arith.mulf %146, %150 : vector<32x512xf32>
    %152 = math.absf %151 : vector<32x512xf32>
    %cst_50 = arith.constant 0.327591091 : f32
    %153 = vector.broadcast %cst_50 : f32 to vector<32x512xf32>
    %154 = arith.mulf %153, %152 : vector<32x512xf32>
    %cst_51 = arith.constant 1.000000e+00 : f32
    %155 = vector.broadcast %cst_51 : f32 to vector<32x512xf32>
    %156 = arith.addf %155, %154 : vector<32x512xf32>
    %157 = tpu.reciprocal %156 {approx = true} : vector<32x512xf32> -> vector<32x512xf32>
    %cst_52 = arith.constant 1.06140542 : f32
    %158 = vector.broadcast %cst_52 : f32 to vector<32x512xf32>
    %159 = arith.mulf %158, %157 : vector<32x512xf32>
    %cst_53 = arith.constant -1.45315206 : f32
    %160 = vector.broadcast %cst_53 : f32 to vector<32x512xf32>
    %161 = arith.addf %159, %160 : vector<32x512xf32>
    %162 = arith.mulf %161, %157 : vector<32x512xf32>
    %cst_54 = arith.constant 1.42141378 : f32
    %163 = vector.broadcast %cst_54 : f32 to vector<32x512xf32>
    %164 = arith.addf %162, %163 : vector<32x512xf32>
    %165 = arith.mulf %164, %157 : vector<32x512xf32>
    %cst_55 = arith.constant -0.284496725 : f32
    %166 = vector.broadcast %cst_55 : f32 to vector<32x512xf32>
    %167 = arith.addf %165, %166 : vector<32x512xf32>
    %168 = arith.mulf %167, %157 : vector<32x512xf32>
    %cst_56 = arith.constant 0.254829586 : f32
    %169 = vector.broadcast %cst_56 : f32 to vector<32x512xf32>
    %170 = arith.addf %168, %169 : vector<32x512xf32>
    %171 = arith.mulf %170, %157 : vector<32x512xf32>
    %cst_57 = arith.constant 0.000000e+00 : f32
    %172 = vector.broadcast %cst_57 : f32 to vector<32x512xf32>
    %173 = arith.subf %172, %152 : vector<32x512xf32>
    %174 = arith.mulf %173, %152 : vector<32x512xf32>
    %175 = math.exp %174 : vector<32x512xf32>
    %176 = arith.mulf %171, %175 : vector<32x512xf32>
    %cst_58 = arith.constant 1.000000e+00 : f32
    %177 = vector.broadcast %cst_58 : f32 to vector<32x512xf32>
    %178 = arith.subf %177, %176 : vector<32x512xf32>
    %cst_59 = arith.constant 0.000000e+00 : f32
    %179 = vector.broadcast %cst_59 : f32 to vector<32x512xf32>
    %180 = arith.cmpf oge, %151, %179 : vector<32x512xf32>
    %cst_60 = arith.constant 0.000000e+00 : f32
    %181 = vector.broadcast %cst_60 : f32 to vector<32x512xf32>
    %182 = arith.subf %181, %178 : vector<32x512xf32>
    %183 = arith.select %180, %178, %182 : vector<32x512xi1>, vector<32x512xf32>
    %cst_61 = arith.constant 1.000000e+00 : f32
    %184 = vector.broadcast %cst_61 : f32 to vector<32x512xf32>
    %185 = arith.addf %184, %183 : vector<32x512xf32>
    %186 = arith.mulf %149, %185 : vector<32x512xf32>
    %c0_62 = arith.constant 0 : index
    %c0_63 = arith.constant 0 : index
    %187 = vector.load %arg10[%c0_62, %c0_63] : memref<32x32xbf16, #tpu.memory_space<vmem>>, vector<32x32xbf16>
    %188 = arith.truncf %186 : vector<32x512xf32> to vector<32x512xbf16>
    %cst_64 = arith.constant dense<0.000000e+00> : vector<32x512xf32>
    %189 = tpu.matmul %187, %188, %cst_64 {dimension_numbers = #tpu.dot_dimension_numbers<[1], [0], [0], [1], [0, 0, 1, 1], [], []>} : vector<32x32xbf16>, vector<32x512xbf16>, vector<32x512xf32> -> vector<32x512xf32>
    %190 = arith.addf %147, %189 : vector<32x512xf32>
    %c0_65 = arith.constant 0 : index
    %c0_66 = arith.constant 0 : index
    %191 = vector.load %arg11[%c0_65, %c0_66] : memref<32x1xf32, #tpu.memory_space<vmem>>, vector<32x1xf32>
    %192 = vector.broadcast %191 : vector<32x1xf32> to vector<32x512xf32>
    %193 = arith.addf %190, %192 : vector<32x512xf32>
    %c0_67 = arith.constant 0 : index
    %c0_68 = arith.constant 0 : index
    %194 = vector.load %arg2[%c0_67, %c0_68] : memref<32x512xf32, #tpu.memory_space<vmem>>, vector<32x512xf32>
    %195 = arith.addf %193, %194 : vector<32x512xf32>
    %c0_69 = arith.constant 0 : index
    %c0_70 = arith.constant 0 : index
    %196 = vector.load %arg12[%c0_69, %c0_70] : memref<32x512xf32, #tpu.memory_space<vmem>>, vector<32x512xf32>
    tpu.vector_store %arg12[%c0_69, %c0_70], %195 {strides = array<i32>} : memref<32x512xf32, #tpu.memory_space<vmem>>, vector<32x512xf32>,
    return
  }
  func.func @transform_0(%arg0: i32) -> (i32, i32, i32) {
    %c0_i32 = arith.constant 0 : i32
    %c0_i32_0 = arith.constant 0 : i32
    %c0_i32_1 = arith.constant 0 : i32
    return %arg0, %c0_i32, %c0_i32_0 : i32, i32, i32
  }
  func.func @transform_1(%arg0: i32) -> (i32, i32) {
    %c0_i32 = arith.constant 0 : i32
    %c0_i32_0 = arith.constant 0 : i32
    return %c0_i32, %arg0 : i32, i32
  }
  func.func @transform_2(%arg0: i32) -> (i32, i32) {
    %c0_i32 = arith.constant 0 : i32
    %c0_i32_0 = arith.constant 0 : i32
    %c0_i32_1 = arith.constant 0 : i32
    return %c0_i32, %c0_i32_0 : i32, i32
  }
  func.func @transform_3(%arg0: i32) -> (i32, i32) {
    %c0_i32 = arith.constant 0 : i32
    %c0_i32_0 = arith.constant 0 : i32
    %c0_i32_1 = arith.constant 0 : i32
    return %c0_i32, %c0_i32_0 : i32, i32
  }
  func.func @transform_4(%arg0: i32) -> (i32, i32) {
    %c0_i32 = arith.constant 0 : i32
    %c0_i32_0 = arith.constant 0 : i32
    %c0_i32_1 = arith.constant 0 : i32
    return %c0_i32, %c0_i32_0 : i32, i32
  }
  func.func @transform_5(%arg0: i32) -> (i32, i32) {
    %c0_i32 = arith.constant 0 : i32
    %c0_i32_0 = arith.constant 0 : i32
    %c0_i32_1 = arith.constant 0 : i32
    return %c0_i32, %c0_i32_0 : i32, i32
  }
  func.func @transform_6(%arg0: i32) -> (i32, i32) {
    %c0_i32 = arith.constant 0 : i32
    %c0_i32_0 = arith.constant 0 : i32
    %c0_i32_1 = arith.constant 0 : i32
    return %c0_i32, %c0_i32_0 : i32, i32
  }
  func.func @transform_7(%arg0: i32) -> (i32, i32) {
    %c0_i32 = arith.constant 0 : i32
    %c0_i32_0 = arith.constant 0 : i32
    %c0_i32_1 = arith.constant 0 : i32
    return %c0_i32, %c0_i32_0 : i32, i32
  }
  func.func @transform_8(%arg0: i32) -> (i32, i32) {
    %c0_i32 = arith.constant 0 : i32
    %c0_i32_0 = arith.constant 0 : i32
    %c0_i32_1 = arith.constant 0 : i32
    return %c0_i32, %c0_i32_0 : i32, i32
  }
  func.func @transform_9(%arg0: i32) -> (i32, i32) {
    %c0_i32 = arith.constant 0 : i32
    %c0_i32_0 = arith.constant 0 : i32
    %c0_i32_1 = arith.constant 0 : i32
    return %c0_i32, %c0_i32_0 : i32, i32
  }
  func.func @transform_10(%arg0: i32) -> (i32, i32) {
    %c0_i32 = arith.constant 0 : i32
    %c0_i32_0 = arith.constant 0 : i32
    %c0_i32_1 = arith.constant 0 : i32
    return %c0_i32, %c0_i32_0 : i32, i32
  }
  func.func @transform_11(%arg0: i32) -> (i32, i32) {
    %c0_i32 = arith.constant 0 : i32
    %c0_i32_0 = arith.constant 0 : i32
    return %c0_i32, %arg0 : i32, i32
  }
}

</mosaic_0001>

<llo_original>
// kernel: tpu_custom_call.1
$region0: #{tpu_custom_call.1}
  #allocation0 [shape = 'u32[]', space=smem, size = 0x4, offset = 0x4, fixed_abs, tag = 'smem constant byte address 0x4 - core index']
  #allocation1 [shape = 'u32[144,128]{1,0:T(1,128)}', space=vmem, size = 0x12000, scoped, tag = 'internal scratch']
  %s0 = inlined_call_operand.hbm [shape: f32[8,128], index: 0, kind: input, shape index: {}]
  %s1 = inlined_call_operand.hbm [shape: f32[8,128], index: 1, kind: output, shape index: {}]
  %s2 = sld [smem:[#allocation0]]
  $region18: #{tpu_custom_call.1} parent=0
    _
  %s4 = ssub.s32 1, %s2
  %s5 = scalar_select 0, %s4, %s2
  $region1: #{tpu_custom_call.1} parent=0
    #allocation2 [shape = 'u8[4096]{0}', space=vmem, size = 0x1000, scoped, tag = 'input window, operand 0, single buffered']
    #allocation3 [shape = 's32[1]{0}', space=sflag, size = 0x4, scoped, tag = 'scoped memory for tpu_custom_call.1']
    #allocation4 [shape = 's32[1]{0}', space=sflag, size = 0x4, scoped, tag = 'scoped memory for tpu_custom_call.1']
    #allocation5 [shape = 'u8[4096]{0}', space=vmem, size = 0x1000, scoped, tag = 'output window, operand 0, single buffered']
    %6 = vsyncpa [#allocation3], 0
    %7 = vsyncpa [#allocation4], 0
    // Predicated region
    $region2: #{tpu_custom_call.1} parent=1 // pred_check
      _
    $region3: #{tpu_custom_call.1} parent=1 // pred_check_branch
      %9 = sbr.rel (0) target = $region5
    $region4: #{tpu_custom_call.1} parent=1 // pred_region
      %s11 = ssub.s32 128, 128
      %12 = vsyncadd [#allocation3], %s11
      %s14 = sshll.u32 [#allocation2], 4
      %s15 = int_to_ptr.vmem [resolvable:$true] %s14
      %17 = dma.hbm_to_vmem [thread:$0]  %s0, 128, %s15, [#allocation3]
    $region5: #{tpu_custom_call.1} parent=1 // pred_fallthru
      _
    // Predicated region
    $region6: #{tpu_custom_call.1} parent=1 // pred_check
      _
    $region7: #{tpu_custom_call.1} parent=1 // pred_check_branch
      %19 = sbr.rel (0) target = $region9
    $region8: #{tpu_custom_call.1} parent=1 // pred_region
      %20 = dma.done [#allocation3], 128
    $region9: #{tpu_custom_call.1} parent=1 // pred_fallthru
      _
    %v21 = vld [vmem:[#allocation2] sm:$0xff]
    %22 = vrot.lane.b32.xlu0 %v21, 3
    %v23 = vpop.permute.xlu0 %22
    %24 = vst [vmem:[#allocation5] sm:$0xff] %v23
    // Predicated region
    $region10: #{tpu_custom_call.1} parent=1 // pred_check
      _
    $region11: #{tpu_custom_call.1} parent=1 // pred_check_branch
      %26 = sbr.rel (0) target = $region13
    $region12: #{tpu_custom_call.1} parent=1 // pred_region
      %s28 = ssub.s32 128, 128
      %29 = vsyncadd [#allocation4], %s28
      %s31 = sshll.u32 [#allocation5], 4
      %s32 = int_to_ptr.vmem [resolvable:$true] %s31
      %34 = dma.vmem_to_hbm [thread:$0]  %s32, 128, %s1, [#allocation4]
    $region13: #{tpu_custom_call.1} parent=1 // pred_fallthru
      _
    // Predicated region
    $region14: #{tpu_custom_call.1} parent=1 // pred_check
      _
    $region15: #{tpu_custom_call.1} parent=1 // pred_check_branch
      %36 = sbr.rel (0) target = $region17
    $region16: #{tpu_custom_call.1} parent=1 // pred_region
      %37 = dma.done [#allocation4], 128
    $region17: #{tpu_custom_call.1} parent=1 // pred_fallthru
      _
    %38 = vsyncpa [#allocation3], 1
    %39 = vsyncpa [#allocation4], 1

// kernel: tpu_custom_call.1
$region0: #{tpu_custom_call.1}
  #allocation0 [shape = 'u32[]', space=smem, size = 0x4, offset = 0x4, fixed_abs, tag = 'smem constant byte address 0x4 - core index']
  #allocation1 [shape = 'u32[144,128]{1,0:T(1,128)}', space=vmem, size = 0x12000, scoped, tag = 'internal scratch']
  #allocation2 [shape = 'f32[16,512]{1,0:T(8,128)}', space=vmem, size = 0x8000, scoped, tag = 'scratch operand']
  %s0 = inlined_call_operand.vmem [shape: f32[4,16,32], index: 0, kind: input, shape index: {}]
  %s1 = inlined_call_operand.vmem [shape: f32[32,512], index: 1, kind: input, shape index: {}]
  %s2 = inlined_call_operand.vmem [shape: f32[8,512], index: 2, kind: input, shape index: {}]
  %s3 = inlined_call_operand.vmem [shape: f32[512,4], index: 3, kind: input, shape index: {}]
  %s4 = inlined_call_operand.vmem [shape: f32[4,512], index: 4, kind: input, shape index: {}]
  %s5 = inlined_call_operand.vmem [shape: f32[32,16], index: 5, kind: input, shape index: {}]
  %s6 = inlined_call_operand.vmem [shape: f32[16,12], index: 6, kind: input, shape index: {}]
  %s7 = inlined_call_operand.vmem [shape: bf16[64,16], index: 7, kind: input, shape index: {}]
  %s8 = inlined_call_operand.vmem [shape: f32[32,1], index: 8, kind: input, shape index: {}]
  %s9 = inlined_call_operand.vmem [shape: bf16[32,32], index: 9, kind: input, shape index: {}]
  %s10 = inlined_call_operand.vmem [shape: f32[32,1], index: 10, kind: input, shape index: {}]
  %s11 = inlined_call_operand.hbm [shape: f32[32,512], index: 11, kind: output, shape index: {}]
  %s12 = sld [smem:[#allocation0]]
  $region54: #{tpu_custom_call.1} parent=0
    _
  %s14 = ssub.s32 1, %s12
  %s15 = scalar_select 0, %s14, %s12
  $region1: #{tpu_custom_call.1} parent=0
    #allocation3 [shape = 'u8[65536]{0}', space=vmem, size = 0x10000, scoped, tag = 'output window, operand 0, single buffered']
    #allocation4 [shape = 's32[1]{0}', space=sflag, size = 0x4, scoped, tag = 'scoped memory for tpu_custom_call.1']
    %16 = vsyncpa [#allocation4], 0
    // Predicated region
    $region2: #{tpu_custom_call.1} parent=1 // pred_check
      _
    $region3: #{tpu_custom_call.1} parent=1 // pred_check_branch
      %18 = sbr.rel (0) target = $region5
    $region4: #{tpu_custom_call.1} parent=1 // pred_region
      _
    $region5: #{tpu_custom_call.1} parent=1 // pred_fallthru
      _
    // Predicated region
    $region6: #{tpu_custom_call.1} parent=1 // pred_check
      _
    $region7: #{tpu_custom_call.1} parent=1 // pred_check_branch
      %20 = sbr.rel (0) target = $region9
    $region8: #{tpu_custom_call.1} parent=1 // pred_region
      _
    $region9: #{tpu_custom_call.1} parent=1 // pred_fallthru
      _
    // Predicated region
    $region10: #{tpu_custom_call.1} parent=1 // pred_check
      _
    $region11: #{tpu_custom_call.1} parent=1 // pred_check_branch
      %22 = sbr.rel (0) target = $region13
    $region12: #{tpu_custom_call.1} parent=1 // pred_region
      _
    $region13: #{tpu_custom_call.1} parent=1 // pred_fallthru
      _
    // Predicated region
    $region14: #{tpu_custom_call.1} parent=1 // pred_check
      _
    $region15: #{tpu_custom_call.1} parent=1 // pred_check_branch
      %24 = sbr.rel (0) target = $region17
    $region16: #{tpu_custom_call.1} parent=1 // pred_region
      _
    $region17: #{tpu_custom_call.1} parent=1 // pred_fallthru
      _
    // Predicated region
    $region18: #{tpu_custom_call.1} parent=1 // pred_check
      _
    $region19: #{tpu_custom_call.1} parent=1 // pred_check_branch
      %26 = sbr.rel (0) target = $region21
    $region20: #{tpu_custom_call.1} parent=1 // pred_region
      _
    $region21: #{tpu_custom_call.1} parent=1 // pred_fallthru
      _
    // Predicated region
    $region22: #{tpu_custom_call.1} parent=1 // pred_check
      _
    $region23: #{tpu_custom_call.1} parent=1 // pred_check_branch
      %28 = sbr.rel (0) target = $region25
    $region24: #{tpu_custom_call.1} parent=1 // pred_region
      _
    $region25: #{tpu_custom_call.1} parent=1 // pred_fallthru
      _
    // Predicated region
    $region26: #{tpu_custom_call.1} parent=1 // pred_check
      _
    $region27: #{tpu_custom_call.1} parent=1 // pred_check_branch
      %30 = sbr.rel (0) target = $region29
    $region28: #{tpu_custom_call.1} parent=1 // pred_region
      _
    $region29: #{tpu_custom_call.1} parent=1 // pred_fallthru
      _
    // Predicated region
    $region30: #{tpu_custom_call.1} parent=1 // pred_check
      _
    $region31: #{tpu_custom_call.1} parent=1 // pred_check_branch
      %32 = sbr.rel (0) target = $region33
    $region32: #{tpu_custom_call.1} parent=1 // pred_region
      _
    $region33: #{tpu_custom_call.1} parent=1 // pred_fallthru
      _
    // Predicated region
    $region34: #{tpu_custom_call.1} parent=1 // pred_check
      _
    $region35: #{tpu_custom_call.1} parent=1 // pred_check_branch
      %34 = sbr.rel (0) target = $region37
    $region36: #{tpu_custom_call.1} parent=1 // pred_region
      _
    $region37: #{tpu_custom_call.1} parent=1 // pred_fallthru
      _
    // Predicated region
    $region38: #{tpu_custom_call.1} parent=1 // pred_check
      _
    $region39: #{tpu_custom_call.1} parent=1 // pred_check_branch
      %36 = sbr.rel (0) target = $region41
    $region40: #{tpu_custom_call.1} parent=1 // pred_region
      _
    $region41: #{tpu_custom_call.1} parent=1 // pred_fallthru
      _
    // Predicated region
    $region42: #{tpu_custom_call.1} parent=1 // pred_check
      _
    $region43: #{tpu_custom_call.1} parent=1 // pred_check_branch
      %38 = sbr.rel (0) target = $region45
    $region44: #{tpu_custom_call.1} parent=1 // pred_region
      _
    $region45: #{tpu_custom_call.1} parent=1 // pred_fallthru
      _
    %v40 = vld [vmem:[%s6] sm:$0xff]
    %v41 = vld [vmem:[%s6 + $0x8] sm:$0xff]
    %v42 = vld [vmem:[%s5] sm:$0xff]
    %v43 = vld [vmem:[%s5 + $0x8] sm:$0xff]
    %v44 = vld [vmem:[%s5 + $0x10] sm:$0xff]
    %v45 = vld [vmem:[%s5 + $0x18] sm:$0xff]
    %v46 = vld [vmem:[%s1] sm:$0xff]
    %v47 = vld [vmem:[%s1 + $0x20] sm:$0xff]
    %v48 = vld [vmem:[%s1 + $0x40] sm:$0xff]
    %v49 = vld [vmem:[%s1 + $0x60] sm:$0xff]
    %v50 = vpack.c.bf16 %v47, %v46
    %v51 = vpack.c.bf16 %v49, %v48
    %v52 = vld [vmem:[%s0] sm:$0xff]
    %v53 = vld [vmem:[%s0 + $0x8] sm:$0xff]
    %v54 = vpack.c.bf16 %v53, %v52
    %vm55 = vcmask 261120
    %v57 = vsel %vm55, %v54, 0
    %59 = vmatprep.subr.bf16.mxu0 0
    %60 = vmatpush1.bf16.msra.mxu0 %v50
    %61 = vmatprep.subr.bf16.mxu0 0
    %62 = vmatpush1.bf16.msra.mxu0 %v51
    %63 = vmatprep.subr.bf16.mxu0 0
    %64 = vmatpush1.bf16.msra.mxu0 0
    %65 = vmatprep.subr.bf16.mxu0 0
    %66 = vmatpush1.bf16.msra.mxu0 0
    %67 = vmatprep.subr.bf16.mxu0 0
    %68 = vmatpush1.bf16.msra.mxu0 0
    %69 = vmatprep.subr.bf16.mxu0 0
    %70 = vmatpush1.bf16.msra.mxu0 0
    %71 = vmatprep.subr.bf16.mxu0 0
    %72 = vmatpush1.bf16.msra.mxu0 0
    %73 = vmatprep.subr.bf16.mxu0 0
    %74 = vmatpush1.bf16.msra.mxu0 0
    %75 = vmatprep.subr.bf16.mxu0 0
    %76 = vmatpush1.bf16.msra.mxu0 0
    %77 = vmatprep.subr.bf16.mxu0 0
    %78 = vmatpush1.bf16.msra.mxu0 0
    %79 = vmatprep.subr.bf16.mxu0 0
    %80 = vmatpush1.bf16.msra.mxu0 0
    %81 = vmatprep.subr.bf16.mxu0 0
    %82 = vmatpush1.bf16.msra.mxu0 0
    %83 = vmatprep.subr.bf16.mxu0 0
    %84 = vmatpush1.bf16.msra.mxu0 0
    %85 = vmatprep.subr.bf16.mxu0 0
    %86 = vmatpush1.bf16.msra.mxu0 0
    %87 = vmatprep.subr.bf16.mxu0 0
    %88 = vmatpush1.bf16.msra.mxu0 0
    %89 = vmatprep.subr.bf16.mxu0 0
    %90 = vmatpush1.bf16.msra.mxu0 0
    %91 = vmatprep.mubr.bf16.mxu0 0
    %92 = vmatmul.mubr.bf16.gmra.mrb[0].mxu0 %v57
    %v93 = vpop.f32.mrb[0].mxu0
    %v94 = vadd.f32 0.0, %v93
    %v95 = vpop.f32.mrb[0].mxu0
    %v96 = vpop.f32.mrb[0].mxu0
    %v97 = vadd.f32 0.0, %v96
    %v98 = vpop.f32.mrb[0].mxu0
    %99 = vdwg.mxu0
    %100 = vst [vmem:[#allocation2] sm:$0xff] %v94
    %101 = vst [vmem:[#allocation2 + $0x20] sm:$0xff] %v97
    %v102 = vld [vmem:[%s1 + $0x8] sm:$0xff]
    %v103 = vld [vmem:[%s1 + $0x28] sm:$0xff]
    %v104 = vld [vmem:[%s1 + $0x48] sm:$0xff]
    %v105 = vld [vmem:[%s1 + $0x68] sm:$0xff]
    %v106 = vpack.c.bf16 %v103, %v102
    %v107 = vpack.c.bf16 %v105, %v104
    %s108 = scalar_lea.vmem %s0, 16
    %v109 = vld [vmem:[%s108] sm:$0xff]
    %v110 = vld [vmem:[%s108 + $0x8] sm:$0xff]
    %v111 = vpack.c.bf16 %v110, %v109
    %v113 = vsel %vm55, %v111, 0
    %115 = vmatprep.subr.bf16.mxu0 0
    %116 = vmatpush1.bf16.msra.mxu0 %v106
    %117 = vmatprep.subr.bf16.mxu0 0
    %118 = vmatpush1.bf16.msra.mxu0 %v107
    %119 = vmatprep.subr.bf16.mxu0 0
    %120 = vmatpush1.bf16.msra.mxu0 0
    %121 = vmatprep.subr.bf16.mxu0 0
    %122 = vmatpush1.bf16.msra.mxu0 0
    %123 = vmatprep.subr.bf16.mxu0 0
    %124 = vmatpush1.bf16.msra.mxu0 0
    %125 = vmatprep.subr.bf16.mxu0 0
    %126 = vmatpush1.bf16.msra.mxu0 0
    %127 = vmatprep.subr.bf16.mxu0 0
    %128 = vmatpush1.bf16.msra.mxu0 0
    %129 = vmatprep.subr.bf16.mxu0 0
    %130 = vmatpush1.bf16.msra.mxu0 0
    %131 = vmatprep.subr.bf16.mxu0 0
    %132 = vmatpush1.bf16.msra.mxu0 0
    %133 = vmatprep.subr.bf16.mxu0 0
    %134 = vmatpush1.bf16.msra.mxu0 0
    %135 = vmatprep.subr.bf16.mxu0 0
    %136 = vmatpush1.bf16.msra.mxu0 0
    %137 = vmatprep.subr.bf16.mxu0 0
    %138 = vmatpush1.bf16.msra.mxu0 0
    %139 = vmatprep.subr.bf16.mxu0 0
    %140 = vmatpush1.bf16.msra.mxu0 0
    %141 = vmatprep.subr.bf16.mxu0 0
    %142 = vmatpush1.bf16.msra.mxu0 0
    %143 = vmatprep.subr.bf16.mxu0 0
    %144 = vmatpush1.bf16.msra.mxu0 0
    %145 = vmatprep.subr.bf16.mxu0 0
    %146 = vmatpush1.bf16.msra.mxu0 0
    %147 = vmatprep.mubr.bf16.mxu0 0
    %148 = vmatmul.mubr.bf16.gmra.mrb[0].mxu0 %v113
    %v149 = vpop.f32.mrb[0].mxu0
    %v150 = vadd.f32 0.0, %v149
    %v151 = vpop.f32.mrb[0].mxu0
    %v152 = vpop.f32.mrb[0].mxu0
    %v153 = vadd.f32 0.0, %v152
    %v154 = vpop.f32.mrb[0].mxu0
    %155 = vdwg.mxu0
    %156 = vst [vmem:[#allocation2 + $0x8] sm:$0xff] %v150
    %157 = vst [vmem:[#allocation2 + $0x28] sm:$0xff] %v153
    %v158 = vld [vmem:[%s1 + $0x10] sm:$0xff]
    %v159 = vld [vmem:[%s1 + $0x30] sm:$0xff]
    %v160 = vld [vmem:[%s1 + $0x50] sm:$0xff]
    %v161 = vld [vmem:[%s1 + $0x70] sm:$0xff]
    %v162 = vpack.c.bf16 %v159, %v158
    %v163 = vpack.c.bf16 %v161, %v160
    %s164 = scalar_lea.vmem %s0, 32
    %v165 = vld [vmem:[%s164] sm:$0xff]
    %v166 = vld [vmem:[%s164 + $0x8] sm:$0xff]
    %v167 = vpack.c.bf16 %v166, %v165
    %v169 = vsel %vm55, %v167, 0
    %171 = vmatprep.subr.bf16.mxu0 0
    %172 = vmatpush1.bf16.msra.mxu0 %v162
    %173 = vmatprep.subr.bf16.mxu0 0
    %174 = vmatpush1.bf16.msra.mxu0 %v163
    %175 = vmatprep.subr.bf16.mxu0 0
    %176 = vmatpush1.bf16.msra.mxu0 0
    %177 = vmatprep.subr.bf16.mxu0 0
    %178 = vmatpush1.bf16.msra.mxu0 0
    %179 = vmatprep.subr.bf16.mxu0 0
    %180 = vmatpush1.bf16.msra.mxu0 0
    %181 = vmatprep.subr.bf16.mxu0 0
    %182 = vmatpush1.bf16.msra.mxu0 0
    %183 = vmatprep.subr.bf16.mxu0 0
    %184 = vmatpush1.bf16.msra.mxu0 0
    %185 = vmatprep.subr.bf16.mxu0 0
    %186 = vmatpush1.bf16.msra.mxu0 0
    %187 = vmatprep.subr.bf16.mxu0 0
    %188 = vmatpush1.bf16.msra.mxu0 0
    %189 = vmatprep.subr.bf16.mxu0 0
    %190 = vmatpush1.bf16.msra.mxu0 0
    %191 = vmatprep.subr.bf16.mxu0 0
    %192 = vmatpush1.bf16.msra.mxu0 0
    %193 = vmatprep.subr.bf16.mxu0 0
    %194 = vmatpush1.bf16.msra.mxu0 0
    %195 = vmatprep.subr.bf16.mxu0 0
    %196 = vmatpush1.bf16.msra.mxu0 0
    %197 = vmatprep.subr.bf16.mxu0 0
    %198 = vmatpush1.bf16.msra.mxu0 0
    %199 = vmatprep.subr.bf16.mxu0 0
    %200 = vmatpush1.bf16.msra.mxu0 0
    %201 = vmatprep.subr.bf16.mxu0 0
    %202 = vmatpush1.bf16.msra.mxu0 0
    %203 = vmatprep.mubr.bf16.mxu0 0
    %204 = vmatmul.mubr.bf16.gmra.mrb[0].mxu0 %v169
    %v205 = vpop.f32.mrb[0].mxu0
    %v206 = vadd.f32 0.0, %v205
    %v207 = vpop.f32.mrb[0].mxu0
    %v208 = vpop.f32.mrb[0].mxu0
    %v209 = vadd.f32 0.0, %v208
    %v210 = vpop.f32.mrb[0].mxu0
    %211 = vdwg.mxu0
    %212 = vst [vmem:[#allocation2 + $0x10] sm:$0xff] %v206
    %213 = vst [vmem:[#allocation2 + $0x30] sm:$0xff] %v209
    %v214 = vld [vmem:[%s1 + $0x18] sm:$0xff]
    %v215 = vld [vmem:[%s1 + $0x38] sm:$0xff]
    %v216 = vld [vmem:[%s1 + $0x58] sm:$0xff]
    %v217 = vld [vmem:[%s1 + $0x78] sm:$0xff]
    %v218 = vpack.c.bf16 %v215, %v214
    %v219 = vpack.c.bf16 %v217, %v216
    %s220 = scalar_lea.vmem %s0, 48
    %v221 = vld [vmem:[%s220] sm:$0xff]
    %v222 = vld [vmem:[%s220 + $0x8] sm:$0xff]
    %v223 = vpack.c.bf16 %v222, %v221
    %v225 = vsel %vm55, %v223, 0
    %227 = vmatprep.subr.bf16.mxu0 0
    %228 = vmatpush1.bf16.msra.mxu0 %v218
    %229 = vmatprep.subr.bf16.mxu0 0
    %230 = vmatpush1.bf16.msra.mxu0 %v219
    %231 = vmatprep.subr.bf16.mxu0 0
    %232 = vmatpush1.bf16.msra.mxu0 0
    %233 = vmatprep.subr.bf16.mxu0 0
    %234 = vmatpush1.bf16.msra.mxu0 0
    %235 = vmatprep.subr.bf16.mxu0 0
    %236 = vmatpush1.bf16.msra.mxu0 0
    %237 = vmatprep.subr.bf16.mxu0 0
    %238 = vmatpush1.bf16.msra.mxu0 0
    %239 = vmatprep.subr.bf16.mxu0 0
    %240 = vmatpush1.bf16.msra.mxu0 0
    %241 = vmatprep.subr.bf16.mxu0 0
    %242 = vmatpush1.bf16.msra.mxu0 0
    %243 = vmatprep.subr.bf16.mxu0 0
    %244 = vmatpush1.bf16.msra.mxu0 0
    %245 = vmatprep.subr.bf16.mxu0 0
    %246 = vmatpush1.bf16.msra.mxu0 0
    %247 = vmatprep.subr.bf16.mxu0 0
    %248 = vmatpush1.bf16.msra.mxu0 0
    %249 = vmatprep.subr.bf16.mxu0 0
    %250 = vmatpush1.bf16.msra.mxu0 0
    %251 = vmatprep.subr.bf16.mxu0 0
    %252 = vmatpush1.bf16.msra.mxu0 0
    %253 = vmatprep.subr.bf16.mxu0 0
    %254 = vmatpush1.bf16.msra.mxu0 0
    %255 = vmatprep.subr.bf16.mxu0 0
    %256 = vmatpush1.bf16.msra.mxu0 0
    %257 = vmatprep.subr.bf16.mxu0 0
    %258 = vmatpush1.bf16.msra.mxu0 0
    %259 = vmatprep.mubr.bf16.mxu0 0
    %260 = vmatmul.mubr.bf16.gmra.mrb[0].mxu0 %v225
    %v261 = vpop.f32.mrb[0].mxu0
    %v262 = vadd.f32 0.0, %v261
    %v263 = vpop.f32.mrb[0].mxu0
    %v264 = vpop.f32.mrb[0].mxu0
    %v265 = vadd.f32 0.0, %v264
    %v266 = vpop.f32.mrb[0].mxu0
    %267 = vdwg.mxu0
    %268 = vst [vmem:[#allocation2 + $0x18] sm:$0xff] %v262
    %269 = vst [vmem:[#allocation2 + $0x38] sm:$0xff] %v265
    %v270 = vld [vmem:[#allocation2] sm:$0xff]
    %v271 = vld [vmem:[#allocation2 + $0x8] sm:$0xff]
    %v272 = vld [vmem:[#allocation2 + $0x10] sm:$0xff]
    %v273 = vld [vmem:[#allocation2 + $0x18] sm:$0xff]
    %v274 = vld [vmem:[#allocation2 + $0x20] sm:$0xff]
    %v275 = vld [vmem:[#allocation2 + $0x28] sm:$0xff]
    %v276 = vld [vmem:[#allocation2 + $0x30] sm:$0xff]
    %v277 = vld [vmem:[#allocation2 + $0x38] sm:$0xff]
    %v278 = vld [vmem:[%s3] sm:$0xff]
    %v279 = vld [vmem:[%s3 + $0x8] sm:$0xff]
    %v280 = vld [vmem:[%s3 + $0x10] sm:$0xff]
    %v281 = vld [vmem:[%s3 + $0x18] sm:$0xff]
    %v282 = vld [vmem:[%s3 + $0x20] sm:$0xff]
    %v283 = vld [vmem:[%s3 + $0x28] sm:$0xff]
    %v284 = vld [vmem:[%s3 + $0x30] sm:$0xff]
    %v285 = vld [vmem:[%s3 + $0x38] sm:$0xff]
    %v286 = vld [vmem:[%s3 + $0x40] sm:$0xff]
    %v287 = vld [vmem:[%s3 + $0x48] sm:$0xff]
    %v288 = vld [vmem:[%s3 + $0x50] sm:$0xff]
    %v289 = vld [vmem:[%s3 + $0x58] sm:$0xff]
    %v290 = vld [vmem:[%s3 + $0x60] sm:$0xff]
    %v291 = vld [vmem:[%s3 + $0x68] sm:$0xff]
    %v292 = vld [vmem:[%s3 + $0x70] sm:$0xff]
    %v293 = vld [vmem:[%s3 + $0x78] sm:$0xff]
    %v294 = vld [vmem:[%s3 + $0x80] sm:$0xff]
    %v295 = vld [vmem:[%s3 + $0x88] sm:$0xff]
    %v296 = vld [vmem:[%s3 + $0x90] sm:$0xff]
    %v297 = vld [vmem:[%s3 + $0x98] sm:$0xff]
    %v298 = vld [vmem:[%s3 + $0xa0] sm:$0xff]
    %v299 = vld [vmem:[%s3 + $0xa8] sm:$0xff]
    %v300 = vld [vmem:[%s3 + $0xb0] sm:$0xff]
    %v301 = vld [vmem:[%s3 + $0xb8] sm:$0xff]
    %v302 = vld [vmem:[%s3 + $0xc0] sm:$0xff]
    %v303 = vld [vmem:[%s3 + $0xc8] sm:$0xff]
    %v304 = vld [vmem:[%s3 + $0xd0] sm:$0xff]
    %v305 = vld [vmem:[%s3 + $0xd8] sm:$0xff]
    %v306 = vld [vmem:[%s3 + $0xe0] sm:$0xff]
    %v307 = vld [vmem:[%s3 + $0xe8] sm:$0xff]
    %v308 = vld [vmem:[%s3 + $0xf0] sm:$0xff]
    %v309 = vld [vmem:[%s3 + $0xf8] sm:$0xff]
    %v310 = vld [vmem:[%s3 + $0x100] sm:$0xff]
    %v311 = vld [vmem:[%s3 + $0x108] sm:$0xff]
    %v312 = vld [vmem:[%s3 + $0x110] sm:$0xff]
    %v313 = vld [vmem:[%s3 + $0x118] sm:$0xff]
    %v314 = vld [vmem:[%s3 + $0x120] sm:$0xff]
    %v315 = vld [vmem:[%s3 + $0x128] sm:$0xff]
    %v316 = vld [vmem:[%s3 + $0x130] sm:$0xff]
    %v317 = vld [vmem:[%s3 + $0x138] sm:$0xff]
    %v318 = vld [vmem:[%s3 + $0x140] sm:$0xff]
    %v319 = vld [vmem:[%s3 + $0x148] sm:$0xff]
    %v320 = vld [vmem:[%s3 + $0x150] sm:$0xff]
    %v321 = vld [vmem:[%s3 + $0x158] sm:$0xff]
    %v322 = vld [vmem:[%s3 + $0x160] sm:$0xff]
    %v323 = vld [vmem:[%s3 + $0x168] sm:$0xff]
    %v324 = vld [vmem:[%s3 + $0x170] sm:$0xff]
    %v325 = vld [vmem:[%s3 + $0x178] sm:$0xff]
    %v326 = vld [vmem:[%s3 + $0x180] sm:$0xff]
    %v327 = vld [vmem:[%s3 + $0x188] sm:$0xff]
    %v328 = vld [vmem:[%s3 + $0x190] sm:$0xff]
    %v329 = vld [vmem:[%s3 + $0x198] sm:$0xff]
    %v330 = vld [vmem:[%s3 + $0x1a0] sm:$0xff]
    %v331 = vld [vmem:[%s3 + $0x1a8] sm:$0xff]
    %v332 = vld [vmem:[%s3 + $0x1b0] sm:$0xff]
    %v333 = vld [vmem:[%s3 + $0x1b8] sm:$0xff]
    %v334 = vld [vmem:[%s3 + $0x1c0] sm:$0xff]
    %v335 = vld [vmem:[%s3 + $0x1c8] sm:$0xff]
    %v336 = vld [vmem:[%s3 + $0x1d0] sm:$0xff]
    %v337 = vld [vmem:[%s3 + $0x1d8] sm:$0xff]
    %v338 = vld [vmem:[%s3 + $0x1e0] sm:$0xff]
    %v339 = vld [vmem:[%s3 + $0x1e8] sm:$0xff]
    %v340 = vld [vmem:[%s3 + $0x1f0] sm:$0xff]
    %v341 = vld [vmem:[%s3 + $0x1f8] sm:$0xff]
    %342 = vmatprep.subr.mxu0 0.0
    %343 = vmatpush1.msra.mxu0 %v278
    %344 = vmatprep.subr.mxu0 0.0
    %345 = vmatpush1.msra.mxu0 %v279
    %346 = vmatprep.subr.mxu0 0.0
    %347 = vmatpush1.msra.mxu0 %v280
    %348 = vmatprep.subr.mxu0 0.0
    %349 = vmatpush1.msra.mxu0 %v281
    %350 = vmatprep.subr.mxu0 0.0
    %351 = vmatpush1.msra.mxu0 %v282
    %352 = vmatprep.subr.mxu0 0.0
    %353 = vmatpush1.msra.mxu0 %v283
    %354 = vmatprep.subr.mxu0 0.0
    %355 = vmatpush1.msra.mxu0 %v284
    %356 = vmatprep.subr.mxu0 0.0
    %357 = vmatpush1.msra.mxu0 %v285
    %358 = vmatprep.subr.mxu0 0.0
    %359 = vmatpush1.msra.mxu0 %v286
    %360 = vmatprep.subr.mxu0 0.0
    %361 = vmatpush1.msra.mxu0 %v287
    %362 = vmatprep.subr.mxu0 0.0
    %363 = vmatpush1.msra.mxu0 %v288
    %364 = vmatprep.subr.mxu0 0.0
    %365 = vmatpush1.msra.mxu0 %v289
    %366 = vmatprep.subr.mxu0 0.0
    %367 = vmatpush1.msra.mxu0 %v290
    %368 = vmatprep.subr.mxu0 0.0
    %369 = vmatpush1.msra.mxu0 %v291
    %370 = vmatprep.subr.mxu0 0.0
    %371 = vmatpush1.msra.mxu0 %v292
    %372 = vmatprep.subr.mxu0 0.0
    %373 = vmatpush1.msra.mxu0 %v293
    %374 = vmatprep.subr.mxu0 0.0
    %375 = vmatpush1.msra.mxu0 %v294
    %376 = vmatprep.subr.mxu0 0.0
    %377 = vmatpush1.msra.mxu0 %v295
    %378 = vmatprep.subr.mxu0 0.0
    %379 = vmatpush1.msra.mxu0 %v296
    %380 = vmatprep.subr.mxu0 0.0
    %381 = vmatpush1.msra.mxu0 %v297
    %382 = vmatprep.subr.mxu0 0.0
    %383 = vmatpush1.msra.mxu0 %v298
    %384 = vmatprep.subr.mxu0 0.0
    %385 = vmatpush1.msra.mxu0 %v299
    %386 = vmatprep.subr.mxu0 0.0
    %387 = vmatpush1.msra.mxu0 %v300
    %388 = vmatprep.subr.mxu0 0.0
    %389 = vmatpush1.msra.mxu0 %v301
    %390 = vmatprep.subr.mxu0 0.0
    %391 = vmatpush1.msra.mxu0 %v302
    %392 = vmatprep.subr.mxu0 0.0
    %393 = vmatpush1.msra.mxu0 %v303
    %394 = vmatprep.subr.mxu0 0.0
    %395 = vmatpush1.msra.mxu0 %v304
    %396 = vmatprep.subr.mxu0 0.0
    %397 = vmatpush1.msra.mxu0 %v305
    %398 = vmatprep.subr.mxu0 0.0
    %399 = vmatpush1.msra.mxu0 %v306
    %400 = vmatprep.subr.mxu0 0.0
    %401 = vmatpush1.msra.mxu0 %v307
    %402 = vmatprep.subr.mxu0 0.0
    %403 = vmatpush1.msra.mxu0 %v308
    %404 = vmatprep.subr.mxu0 0.0
    %405 = vmatpush1.msra.mxu0 %v309
    %406 = vmatprep.mubr.f32.mxu0 %v271
    %407 = vmatmul.mubr.f32.gmra.mrb[0].mxu0 %v270
    %v408 = vpop.f32.mrb[0].mxu0
    %v409 = vadd.f32 0.0, %v408
    %v410 = vpop.f32.mrb[0].mxu0
    %411 = vmatprep.mubr.f32.mxu0 %v275
    %412 = vmatmul.mubr.f32.gmra.mrb[0].mxu0 %v274
    %v413 = vpop.f32.mrb[0].mxu0
    %v414 = vadd.f32 0.0, %v413
    %v415 = vpop.f32.mrb[0].mxu0
    %416 = vdwg.mxu0
    %417 = vmatprep.subr.mxu0 0.0
    %418 = vmatpush1.msra.mxu0 %v310
    %419 = vmatprep.subr.mxu0 0.0
    %420 = vmatpush1.msra.mxu0 %v311
    %421 = vmatprep.subr.mxu0 0.0
    %422 = vmatpush1.msra.mxu0 %v312
    %423 = vmatprep.subr.mxu0 0.0
    %424 = vmatpush1.msra.mxu0 %v313
    %425 = vmatprep.subr.mxu0 0.0
    %426 = vmatpush1.msra.mxu0 %v314
    %427 = vmatprep.subr.mxu0 0.0
    %428 = vmatpush1.msra.mxu0 %v315
    %429 = vmatprep.subr.mxu0 0.0
    %430 = vmatpush1.msra.mxu0 %v316
    %431 = vmatprep.subr.mxu0 0.0
    %432 = vmatpush1.msra.mxu0 %v317
    %433 = vmatprep.subr.mxu0 0.0
    %434 = vmatpush1.msra.mxu0 %v318
    %435 = vmatprep.subr.mxu0 0.0
    %436 = vmatpush1.msra.mxu0 %v319
    %437 = vmatprep.subr.mxu0 0.0
    %438 = vmatpush1.msra.mxu0 %v320
    %439 = vmatprep.subr.mxu0 0.0
    %440 = vmatpush1.msra.mxu0 %v321
    %441 = vmatprep.subr.mxu0 0.0
    %442 = vmatpush1.msra.mxu0 %v322
    %443 = vmatprep.subr.mxu0 0.0
    %444 = vmatpush1.msra.mxu0 %v323
    %445 = vmatprep.subr.mxu0 0.0
    %446 = vmatpush1.msra.mxu0 %v324
    %447 = vmatprep.subr.mxu0 0.0
    %448 = vmatpush1.msra.mxu0 %v325
    %449 = vmatprep.subr.mxu0 0.0
    %450 = vmatpush1.msra.mxu0 %v326
    %451 = vmatprep.subr.mxu0 0.0
    %452 = vmatpush1.msra.mxu0 %v327
    %453 = vmatprep.subr.mxu0 0.0
    %454 = vmatpush1.msra.mxu0 %v328
    %455 = vmatprep.subr.mxu0 0.0
    %456 = vmatpush1.msra.mxu0 %v329
    %457 = vmatprep.subr.mxu0 0.0
    %458 = vmatpush1.msra.mxu0 %v330
    %459 = vmatprep.subr.mxu0 0.0
    %460 = vmatpush1.msra.mxu0 %v331
    %461 = vmatprep.subr.mxu0 0.0
    %462 = vmatpush1.msra.mxu0 %v332
    %463 = vmatprep.subr.mxu0 0.0
    %464 = vmatpush1.msra.mxu0 %v333
    %465 = vmatprep.subr.mxu0 0.0
    %466 = vmatpush1.msra.mxu0 %v334
    %467 = vmatprep.subr.mxu0 0.0
    %468 = vmatpush1.msra.mxu0 %v335
    %469 = vmatprep.subr.mxu0 0.0
    %470 = vmatpush1.msra.mxu0 %v336
    %471 = vmatprep.subr.mxu0 0.0
    %472 = vmatpush1.msra.mxu0 %v337
    %473 = vmatprep.subr.mxu0 0.0
    %474 = vmatpush1.msra.mxu0 %v338
    %475 = vmatprep.subr.mxu0 0.0
    %476 = vmatpush1.msra.mxu0 %v339
    %477 = vmatprep.subr.mxu0 0.0
    %478 = vmatpush1.msra.mxu0 %v340
    %479 = vmatprep.subr.mxu0 0.0
    %480 = vmatpush1.msra.mxu0 %v341
    %481 = vmatprep.mubr.f32.mxu0 %v273
    %482 = vmatmul.mubr.f32.gmra.mrb[0].mxu0 %v272
    %v483 = vpop.f32.mrb[0].mxu0
    %v484 = vadd.f32 %v409, %v483
    %v485 = vpop.f32.mrb[0].mxu0
    %486 = vmatprep.mubr.f32.mxu0 %v277
    %487 = vmatmul.mubr.f32.gmra.mrb[0].mxu0 %v276
    %v488 = vpop.f32.mrb[0].mxu0
    %v489 = vadd.f32 %v414, %v488
    %v490 = vpop.f32.mrb[0].mxu0
    %491 = vdwg.mxu0
    %493 = vset.pattern.permute.xlu0 10
    %494 = vperm.xlu0 %493, %v40
    %v495 = vpop.permute.xlu0 %494
    %498 = vset.pattern.permute.xlu0 10
    %499 = vperm.xlu0 %498, %v41
    %v500 = vpop.permute.xlu0 %499
    %vm502 = vcmask 130048
    %v504 = vsel %vm502, %v42, 0
    %v507 = vsel %vm502, %v43, 0
    %509 = vmatprep.subr.mxu0 0.0
    %510 = vmatpush1.msra.mxu0 %v484
    %511 = vmatprep.subr.mxu0 0.0
    %512 = vmatpush1.msra.mxu0 %v489
    %513 = vmatprep.subr.mxu0 0.0
    %514 = vmatpush1.msra.mxu0 0.0
    %515 = vmatprep.subr.mxu0 0.0
    %516 = vmatpush1.msra.mxu0 0.0
    %517 = vmatprep.subr.mxu0 0.0
    %518 = vmatpush1.msra.mxu0 0.0
    %519 = vmatprep.subr.mxu0 0.0
    %520 = vmatpush1.msra.mxu0 0.0
    %521 = vmatprep.subr.mxu0 0.0
    %522 = vmatpush1.msra.mxu0 0.0
    %523 = vmatprep.subr.mxu0 0.0
    %524 = vmatpush1.msra.mxu0 0.0
    %525 = vmatprep.subr.mxu0 0.0
    %526 = vmatpush1.msra.mxu0 0.0
    %527 = vmatprep.subr.mxu0 0.0
    %528 = vmatpush1.msra.mxu0 0.0
    %529 = vmatprep.subr.mxu0 0.0
    %530 = vmatpush1.msra.mxu0 0.0
    %531 = vmatprep.subr.mxu0 0.0
    %532 = vmatpush1.msra.mxu0 0.0
    %533 = vmatprep.subr.mxu0 0.0
    %534 = vmatpush1.msra.mxu0 0.0
    %535 = vmatprep.subr.mxu0 0.0
    %536 = vmatpush1.msra.mxu0 0.0
    %537 = vmatprep.subr.mxu0 0.0
    %538 = vmatpush1.msra.mxu0 0.0
    %539 = vmatprep.subr.mxu0 0.0
    %540 = vmatpush1.msra.mxu0 0.0
    %541 = vmatprep.subr.mxu0 0.0
    %542 = vmatpush1.msra.mxu0 0.0
    %543 = vmatprep.subr.mxu0 0.0
    %544 = vmatpush1.msra.mxu0 0.0
    %545 = vmatprep.subr.mxu0 0.0
    %546 = vmatpush1.msra.mxu0 0.0
    %547 = vmatprep.subr.mxu0 0.0
    %548 = vmatpush1.msra.mxu0 0.0
    %549 = vmatprep.subr.mxu0 0.0
    %550 = vmatpush1.msra.mxu0 0.0
    %551 = vmatprep.subr.mxu0 0.0
    %552 = vmatpush1.msra.mxu0 0.0
    %553 = vmatprep.subr.mxu0 0.0
    %554 = vmatpush1.msra.mxu0 0.0
    %555 = vmatprep.subr.mxu0 0.0
    %556 = vmatpush1.msra.mxu0 0.0
    %557 = vmatprep.subr.mxu0 0.0
    %558 = vmatpush1.msra.mxu0 0.0
    %559 = vmatprep.subr.mxu0 0.0
    %560 = vmatpush1.msra.mxu0 0.0
    %561 = vmatprep.subr.mxu0 0.0
    %562 = vmatpush1.msra.mxu0 0.0
    %563 = vmatprep.subr.mxu0 0.0
    %564 = vmatpush1.msra.mxu0 0.0
    %565 = vmatprep.subr.mxu0 0.0
    %566 = vmatpush1.msra.mxu0 0.0
    %567 = vmatprep.subr.mxu0 0.0
    %568 = vmatpush1.msra.mxu0 0.0
    %569 = vmatprep.subr.mxu0 0.0
    %570 = vmatpush1.msra.mxu0 0.0
    %571 = vmatprep.subr.mxu0 0.0
    %572 = vmatpush1.msra.mxu0 0.0
    %573 = vmatprep.mubr.f32.mxu0 0.0
    %574 = vmatmul.mubr.f32.gmra.mrb[0].mxu0 %v504
    %v575 = vpop.f32.mrb[0].mxu0
    %v576 = vadd.f32 %v495, %v575
    %v577 = vpop.f32.mrb[0].mxu0
    %578 = vmatprep.mubr.f32.mxu0 0.0
    %579 = vmatmul.mubr.f32.gmra.mrb[0].mxu0 %v507
    %v580 = vpop.f32.mrb[0].mxu0
    %v581 = vadd.f32 %v500, %v580
    %v582 = vpop.f32.mrb[0].mxu0
    %583 = vdwg.mxu0
    %v584 = vmax.f32 %v576, 0.0
    %v585 = vmax.f32 %v581, 0.0
    %586 = vset.pattern.permute.xlu0 11
    %587 = vperm.xlu0 %586, %v40
    %v588 = vpop.permute.xlu0 %587
    %590 = vset.pattern.permute.xlu0 11
    %591 = vperm.xlu0 %590, %v41
    %v592 = vpop.permute.xlu0 %591
    %v595 = vsel %vm502, %v44, 0
    %v598 = vsel %vm502, %v45, 0
    %600 = vmatprep.subr.mxu0 0.0
    %601 = vmatpush1.msra.mxu0 %v584
    %602 = vmatprep.subr.mxu0 0.0
    %603 = vmatpush1.msra.mxu0 %v585
    %604 = vmatprep.subr.mxu0 0.0
    %605 = vmatpush1.msra.mxu0 0.0
    %606 = vmatprep.subr.mxu0 0.0
    %607 = vmatpush1.msra.mxu0 0.0
    %608 = vmatprep.subr.mxu0 0.0
    %609 = vmatpush1.msra.mxu0 0.0
    %610 = vmatprep.subr.mxu0 0.0
    %611 = vmatpush1.msra.mxu0 0.0
    %612 = vmatprep.subr.mxu0 0.0
    %613 = vmatpush1.msra.mxu0 0.0
    %614 = vmatprep.subr.mxu0 0.0
    %615 = vmatpush1.msra.mxu0 0.0
    %616 = vmatprep.subr.mxu0 0.0
    %617 = vmatpush1.msra.mxu0 0.0
    %618 = vmatprep.subr.mxu0 0.0
    %619 = vmatpush1.msra.mxu0 0.0
    %620 = vmatprep.subr.mxu0 0.0
    %621 = vmatpush1.msra.mxu0 0.0
    %622 = vmatprep.subr.mxu0 0.0
    %623 = vmatpush1.msra.mxu0 0.0
    %624 = vmatprep.subr.mxu0 0.0
    %625 = vmatpush1.msra.mxu0 0.0
    %626 = vmatprep.subr.mxu0 0.0
    %627 = vmatpush1.msra.mxu0 0.0
    %628 = vmatprep.subr.mxu0 0.0
    %629 = vmatpush1.msra.mxu0 0.0
    %630 = vmatprep.subr.mxu0 0.0
    %631 = vmatpush1.msra.mxu0 0.0
    %632 = vmatprep.subr.mxu0 0.0
    %633 = vmatpush1.msra.mxu0 0.0
    %634 = vmatprep.subr.mxu0 0.0
    %635 = vmatpush1.msra.mxu0 0.0
    %636 = vmatprep.subr.mxu0 0.0
    %637 = vmatpush1.msra.mxu0 0.0
    %638 = vmatprep.subr.mxu0 0.0
    %639 = vmatpush1.msra.mxu0 0.0
    %640 = vmatprep.subr.mxu0 0.0
    %641 = vmatpush1.msra.mxu0 0.0
    %642 = vmatprep.subr.mxu0 0.0
    %643 = vmatpush1.msra.mxu0 0.0
    %644 = vmatprep.subr.mxu0 0.0
    %645 = vmatpush1.msra.mxu0 0.0
    %646 = vmatprep.subr.mxu0 0.0
    %647 = vmatpush1.msra.mxu0 0.0
    %648 = vmatprep.subr.mxu0 0.0
    %649 = vmatpush1.msra.mxu0 0.0
    %650 = vmatprep.subr.mxu0 0.0
    %651 = vmatpush1.msra.mxu0 0.0
    %652 = vmatprep.subr.mxu0 0.0
    %653 = vmatpush1.msra.mxu0 0.0
    %654 = vmatprep.subr.mxu0 0.0
    %655 = vmatpush1.msra.mxu0 0.0
    %656 = vmatprep.subr.mxu0 0.0
    %657 = vmatpush1.msra.mxu0 0.0
    %658 = vmatprep.subr.mxu0 0.0
    %659 = vmatpush1.msra.mxu0 0.0
    %660 = vmatprep.subr.mxu0 0.0
    %661 = vmatpush1.msra.mxu0 0.0
    %662 = vmatprep.subr.mxu0 0.0
    %663 = vmatpush1.msra.mxu0 0.0
    %664 = vmatprep.mubr.f32.mxu0 0.0
    %665 = vmatmul.mubr.f32.gmra.mrb[0].mxu0 %v595
    %v666 = vpop.f32.mrb[0].mxu0
    %v667 = vadd.f32 %v588, %v666
    %v668 = vpop.f32.mrb[0].mxu0
    %669 = vmatprep.mubr.f32.mxu0 0.0
    %670 = vmatmul.mubr.f32.gmra.mrb[0].mxu0 %v598
    %v671 = vpop.f32.mrb[0].mxu0
    %v672 = vadd.f32 %v592, %v671
    %v673 = vpop.f32.mrb[0].mxu0
    %674 = vdwg.mxu0
    %v675 = vxor.u32 %v667, 2147483648
    %v676 = vxor.u32 %v672, 2147483648
    %v677 = vmul.f32 %v675, 1.442695
    %v678 = vpow.pop %v677
    %v679 = vmul.f32 %v676, 1.442695
    %v680 = vpow.pop %v679
    %v681 = vadd.f32 %v678, 1.0
    %v682 = vadd.f32 %v680, 1.0
    %v683 = vrcp.pop %v681
    %v684 = vmul.f32 1.0, %v683
    %v685 = vrcp.pop %v682
    %v686 = vmul.f32 1.0, %v685
    %v687 = vld [vmem:[%s4] sm:$0xff]
    %v688 = vld [vmem:[%s4 + $0x8] sm:$0xff]
    %v691 = vcombine.high %v687, %v687
    %v692 = vcombine.high %v688, %v688
    %vm693 = vcmask 31744
    %v695 = vsel %vm693, %v684, 0
    %v698 = vsel %vm693, %v686, 0
    %vm700 = vcmask 1043456
    %v701 = vsel %vm700, %v687, 0
    %v703 = vsel %vm700, %v691, 0
    %v705 = vsel %vm700, %v688, 0
    %v707 = vsel %vm700, %v692, 0
    %709 = vmatprep.subr.mxu0 %v703
    %710 = vmatpush1.msra.mxu0 %v701
    %711 = vmatprep.subr.mxu0 0.0
    %712 = vmatpush1.msra.mxu0 0.0
    %713 = vmatprep.subr.mxu0 0.0
    %714 = vmatpush1.msra.mxu0 0.0
    %715 = vmatprep.subr.mxu0 0.0
    %716 = vmatpush1.msra.mxu0 0.0
    %717 = vmatprep.subr.mxu0 0.0
    %718 = vmatpush1.msra.mxu0 0.0
    %719 = vmatprep.subr.mxu0 0.0
    %720 = vmatpush1.msra.mxu0 0.0
    %721 = vmatprep.subr.mxu0 0.0
    %722 = vmatpush1.msra.mxu0 0.0
    %723 = vmatprep.subr.mxu0 0.0
    %724 = vmatpush1.msra.mxu0 0.0
    %725 = vmatprep.subr.mxu0 0.0
    %726 = vmatpush1.msra.mxu0 0.0
    %727 = vmatprep.subr.mxu0 0.0
    %728 = vmatpush1.msra.mxu0 0.0
    %729 = vmatprep.subr.mxu0 0.0
    %730 = vmatpush1.msra.mxu0 0.0
    %731 = vmatprep.subr.mxu0 0.0
    %732 = vmatpush1.msra.mxu0 0.0
    %733 = vmatprep.subr.mxu0 0.0
    %734 = vmatpush1.msra.mxu0 0.0
    %735 = vmatprep.subr.mxu0 0.0
    %736 = vmatpush1.msra.mxu0 0.0
    %737 = vmatprep.subr.mxu0 0.0
    %738 = vmatpush1.msra.mxu0 0.0
    %739 = vmatprep.subr.mxu0 0.0
    %740 = vmatpush1.msra.mxu0 0.0
    %741 = vmatprep.subr.mxu0 0.0
    %742 = vmatpush1.msra.mxu0 0.0
    %743 = vmatprep.subr.mxu0 0.0
    %744 = vmatpush1.msra.mxu0 0.0
    %745 = vmatprep.subr.mxu0 0.0
    %746 = vmatpush1.msra.mxu0 0.0
    %747 = vmatprep.subr.mxu0 0.0
    %748 = vmatpush1.msra.mxu0 0.0
    %749 = vmatprep.subr.mxu0 0.0
    %750 = vmatpush1.msra.mxu0 0.0
    %751 = vmatprep.subr.mxu0 0.0
    %752 = vmatpush1.msra.mxu0 0.0
    %753 = vmatprep.subr.mxu0 0.0
    %754 = vmatpush1.msra.mxu0 0.0
    %755 = vmatprep.subr.mxu0 0.0
    %756 = vmatpush1.msra.mxu0 0.0
    %757 = vmatprep.subr.mxu0 0.0
    %758 = vmatpush1.msra.mxu0 0.0
    %759 = vmatprep.subr.mxu0 0.0
    %760 = vmatpush1.msra.mxu0 0.0
    %761 = vmatprep.subr.mxu0 0.0
    %762 = vmatpush1.msra.mxu0 0.0
    %763 = vmatprep.subr.mxu0 0.0
    %764 = vmatpush1.msra.mxu0 0.0
    %765 = vmatprep.subr.mxu0 0.0
    %766 = vmatpush1.msra.mxu0 0.0
    %767 = vmatprep.subr.mxu0 0.0
    %768 = vmatpush1.msra.mxu0 0.0
    %769 = vmatprep.subr.mxu0 0.0
    %770 = vmatpush1.msra.mxu0 0.0
    %771 = vmatprep.subr.mxu0 0.0
    %772 = vmatpush1.msra.mxu0 0.0
    %773 = vmatprep.mubr.f32.mxu0 0.0
    %774 = vmatmul.mubr.f32.gmra.mrb[0].mxu0 %v695
    %v775 = vpop.f32.mrb[0].mxu0
    %v776 = vadd.f32 0.0, %v775
    %v777 = vpop.f32.mrb[0].mxu0
    %v778 = vadd.f32 0.0, %v777
    %779 = vmatprep.mubr.f32.mxu0 0.0
    %780 = vmatmul.mubr.f32.gmra.mrb[0].mxu0 %v698
    %v781 = vpop.f32.mrb[0].mxu0
    %v782 = vadd.f32 0.0, %v781
    %v783 = vpop.f32.mrb[0].mxu0
    %v784 = vadd.f32 0.0, %v783
    %785 = vdwg.mxu0
    %786 = vmatprep.subr.mxu0 %v707
    %787 = vmatpush1.msra.mxu0 %v705
    %788 = vmatprep.subr.mxu0 0.0
    %789 = vmatpush1.msra.mxu0 0.0
    %790 = vmatprep.subr.mxu0 0.0
    %791 = vmatpush1.msra.mxu0 0.0
    %792 = vmatprep.subr.mxu0 0.0
    %793 = vmatpush1.msra.mxu0 0.0
    %794 = vmatprep.subr.mxu0 0.0
    %795 = vmatpush1.msra.mxu0 0.0
    %796 = vmatprep.subr.mxu0 0.0
    %797 = vmatpush1.msra.mxu0 0.0
    %798 = vmatprep.subr.mxu0 0.0
    %799 = vmatpush1.msra.mxu0 0.0
    %800 = vmatprep.subr.mxu0 0.0
    %801 = vmatpush1.msra.mxu0 0.0
    %802 = vmatprep.subr.mxu0 0.0
    %803 = vmatpush1.msra.mxu0 0.0
    %804 = vmatprep.subr.mxu0 0.0
    %805 = vmatpush1.msra.mxu0 0.0
    %806 = vmatprep.subr.mxu0 0.0
    %807 = vmatpush1.msra.mxu0 0.0
    %808 = vmatprep.subr.mxu0 0.0
    %809 = vmatpush1.msra.mxu0 0.0
    %810 = vmatprep.subr.mxu0 0.0
    %811 = vmatpush1.msra.mxu0 0.0
    %812 = vmatprep.subr.mxu0 0.0
    %813 = vmatpush1.msra.mxu0 0.0
    %814 = vmatprep.subr.mxu0 0.0
    %815 = vmatpush1.msra.mxu0 0.0
    %816 = vmatprep.subr.mxu0 0.0
    %817 = vmatpush1.msra.mxu0 0.0
    %818 = vmatprep.subr.mxu0 0.0
    %819 = vmatpush1.msra.mxu0 0.0
    %820 = vmatprep.subr.mxu0 0.0
    %821 = vmatpush1.msra.mxu0 0.0
    %822 = vmatprep.subr.mxu0 0.0
    %823 = vmatpush1.msra.mxu0 0.0
    %824 = vmatprep.subr.mxu0 0.0
    %825 = vmatpush1.msra.mxu0 0.0
    %826 = vmatprep.subr.mxu0 0.0
    %827 = vmatpush1.msra.mxu0 0.0
    %828 = vmatprep.subr.mxu0 0.0
    %829 = vmatpush1.msra.mxu0 0.0
    %830 = vmatprep.subr.mxu0 0.0
    %831 = vmatpush1.msra.mxu0 0.0
    %832 = vmatprep.subr.mxu0 0.0
    %833 = vmatpush1.msra.mxu0 0.0
    %834 = vmatprep.subr.mxu0 0.0
    %835 = vmatpush1.msra.mxu0 0.0
    %836 = vmatprep.subr.mxu0 0.0
    %837 = vmatpush1.msra.mxu0 0.0
    %838 = vmatprep.subr.mxu0 0.0
    %839 = vmatpush1.msra.mxu0 0.0
    %840 = vmatprep.subr.mxu0 0.0
    %841 = vmatpush1.msra.mxu0 0.0
    %842 = vmatprep.subr.mxu0 0.0
    %843 = vmatpush1.msra.mxu0 0.0
    %844 = vmatprep.subr.mxu0 0.0
    %845 = vmatpush1.msra.mxu0 0.0
    %846 = vmatprep.subr.mxu0 0.0
    %847 = vmatpush1.msra.mxu0 0.0
    %848 = vmatprep.subr.mxu0 0.0
    %849 = vmatpush1.msra.mxu0 0.0
    %850 = vmatprep.mubr.f32.mxu0 0.0
    %851 = vmatmul.mubr.f32.gmra.mrb[0].mxu0 %v695
    %v852 = vpop.f32.mrb[0].mxu0
    %v853 = vadd.f32 0.0, %v852
    %v854 = vpop.f32.mrb[0].mxu0
    %v855 = vadd.f32 0.0, %v854
    %856 = vmatprep.mubr.f32.mxu0 0.0
    %857 = vmatmul.mubr.f32.gmra.mrb[0].mxu0 %v698
    %v858 = vpop.f32.mrb[0].mxu0
    %v859 = vadd.f32 0.0, %v858
    %v860 = vpop.f32.mrb[0].mxu0
    %v861 = vadd.f32 0.0, %v860
    %862 = vdwg.mxu0
    %v863 = vmul.f32 %v270, %v776
    %v864 = vmul.f32 %v271, %v778
    %v865 = vmul.f32 %v272, %v853
    %v866 = vmul.f32 %v273, %v855
    %v867 = vmul.f32 %v274, %v782
    %v868 = vmul.f32 %v275, %v784
    %v869 = vmul.f32 %v276, %v859
    %v870 = vmul.f32 %v277, %v861
    %v871 = vld [vmem:[%s2] sm:$0xff]
    %v872 = vld [vmem:[%s2 + $0x8] sm:$0xff]
    %v873 = vld [vmem:[%s2 + $0x10] sm:$0xff]
    %v874 = vld [vmem:[%s2 + $0x18] sm:$0xff]
    %875 = vset.pattern.permute.xlu0 0
    %876 = vperm.xlu0 %875, %v40
    %v877 = vpop.permute.xlu0 %876
    %879 = vset.pattern.permute.xlu0 0
    %880 = vperm.xlu0 %879, %v41
    %v881 = vpop.permute.xlu0 %880
    %v883 = vmul.f32 %v877, %v863
    %v884 = vmul.f32 %v877, %v864
    %v885 = vmul.f32 %v877, %v865
    %v886 = vmul.f32 %v877, %v866
    %v887 = vmul.f32 %v881, %v867
    %v888 = vmul.f32 %v881, %v868
    %v889 = vmul.f32 %v881, %v869
    %v890 = vmul.f32 %v881, %v870
    %891 = vset.pattern.permute.xlu0 1
    %892 = vperm.xlu0 %891, %v40
    %v893 = vpop.permute.xlu0 %892
    %895 = vset.pattern.permute.xlu0 1
    %896 = vperm.xlu0 %895, %v41
    %v897 = vpop.permute.xlu0 %896
    %v899 = vadd.f32 %v883, %v893
    %v900 = vadd.f32 %v884, %v893
    %v901 = vadd.f32 %v885, %v893
    %v902 = vadd.f32 %v886, %v893
    %v903 = vadd.f32 %v887, %v897
    %v904 = vadd.f32 %v888, %v897
    %v905 = vadd.f32 %v889, %v897
    %v906 = vadd.f32 %v890, %v897
    %909 = vrot.lane.b32.xlu0 %v866, 9
    %v910 = vpop.permute.xlu0 %909
    %911 = vrot.lane.b32.xlu0 %v870, 9
    %v912 = vpop.permute.xlu0 %911
    %921 = vrot.lane.b32.xlu0 %v863, 9
    %v922 = vpop.permute.xlu0 %921
    %923 = vrot.lane.b32.xlu0 %v864, 9
    %v924 = vpop.permute.xlu0 %923
    %925 = vrot.lane.b32.xlu0 %v865, 9
    %v926 = vpop.permute.xlu0 %925
    %927 = vrot.lane.b32.xlu0 %v867, 9
    %v928 = vpop.permute.xlu0 %927
    %929 = vrot.lane.b32.xlu0 %v868, 9
    %v930 = vpop.permute.xlu0 %929
    %931 = vrot.lane.b32.xlu0 %v869, 9
    %v932 = vpop.permute.xlu0 %931
    %vm933 = vcmask 72704
    %v934 = vsel %vm933, %v922, %v924
    %v935 = vsel %vm933, %v924, %v926
    %v936 = vsel %vm933, %v926, %v910
    %v937 = vsel %vm933, %v928, %v930
    %v938 = vsel %vm933, %v930, %v932
    %v939 = vsel %vm933, %v932, %v912
    %v948 = vsel %vm933, %v910, %v922
    %v949 = vsel %vm933, %v912, %v928
    %v950 = vlaneseq
    %v951 = vshrl.u32 %v950, 7
    %v952 = vsub.s32 0, %v951
    %v953 = vrot.slane %v871, %v952
    %v954 = vlaneseq
    %v955 = vshrl.u32 %v954, 7
    %v956 = vsub.s32 0, %v955
    %v957 = vrot.slane %v872, %v956
    %v958 = vlaneseq
    %v959 = vshrl.u32 %v958, 7
    %v960 = vsub.s32 0, %v959
    %v961 = vrot.slane %v873, %v960
    %v962 = vlaneseq
    %v963 = vshrl.u32 %v962, 7
    %v964 = vsub.s32 0, %v963
    %v965 = vrot.slane %v874, %v964
    %v966 = vmul.f32 %v948, %v953
    %v967 = vmul.f32 %v934, %v957
    %v968 = vmul.f32 %v935, %v961
    %v969 = vmul.f32 %v936, %v965
    %v970 = vmul.f32 %v949, %v953
    %v971 = vmul.f32 %v937, %v957
    %v972 = vmul.f32 %v938, %v961
    %v973 = vmul.f32 %v939, %v965
    %974 = vset.pattern.permute.xlu0 2
    %975 = vperm.xlu0 %974, %v40
    %v976 = vpop.permute.xlu0 %975
    %978 = vset.pattern.permute.xlu0 2
    %979 = vperm.xlu0 %978, %v41
    %v980 = vpop.permute.xlu0 %979
    %v982 = vmul.f32 %v976, %v966
    %v983 = vmul.f32 %v976, %v967
    %v984 = vmul.f32 %v976, %v968
    %v985 = vmul.f32 %v976, %v969
    %v986 = vmul.f32 %v980, %v970
    %v987 = vmul.f32 %v980, %v971
    %v988 = vmul.f32 %v980, %v972
    %v989 = vmul.f32 %v980, %v973
    %v990 = vadd.f32 %v899, %v982
    %v991 = vadd.f32 %v900, %v983
    %v992 = vadd.f32 %v901, %v984
    %v993 = vadd.f32 %v902, %v985
    %v994 = vadd.f32 %v903, %v986
    %v995 = vadd.f32 %v904, %v987
    %v996 = vadd.f32 %v905, %v988
    %v997 = vadd.f32 %v906, %v989
    %998 = vrot.lane.b32.xlu0 %v866, 8
    %v999 = vpop.permute.xlu0 %998
    %1000 = vrot.lane.b32.xlu0 %v870, 8
    %v1001 = vpop.permute.xlu0 %1000
    %1004 = vrot.lane.b32.xlu0 %v863, 8
    %v1005 = vpop.permute.xlu0 %1004
    %1006 = vrot.lane.b32.xlu0 %v864, 8
    %v1007 = vpop.permute.xlu0 %1006
    %1008 = vrot.lane.b32.xlu0 %v865, 8
    %v1009 = vpop.permute.xlu0 %1008
    %1010 = vrot.lane.b32.xlu0 %v867, 8
    %v1011 = vpop.permute.xlu0 %1010
    %1012 = vrot.lane.b32.xlu0 %v868, 8
    %v1013 = vpop.permute.xlu0 %1012
    %1014 = vrot.lane.b32.xlu0 %v869, 8
    %v1015 = vpop.permute.xlu0 %1014
    %vm1016 = vcmask 64512
    %v1017 = vsel %vm1016, %v1005, %v1007
    %v1018 = vsel %vm1016, %v1007, %v1009
    %v1019 = vsel %vm1016, %v1009, %v999
    %v1020 = vsel %vm1016, %v1011, %v1013
    %v1021 = vsel %vm1016, %v1013, %v1015
    %v1022 = vsel %vm1016, %v1015, %v1001
    %v1031 = vsel %vm1016, %v999, %v1005
    %v1032 = vsel %vm1016, %v1001, %v1011
    %v1033 = vlaneseq
    %v1034 = vshrl.u32 %v1033, 7
    %v1035 = vsub.s32 1, %v1034
    %v1036 = vrot.slane %v871, %v1035
    %v1037 = vlaneseq
    %v1038 = vshrl.u32 %v1037, 7
    %v1039 = vsub.s32 1, %v1038
    %v1040 = vrot.slane %v872, %v1039
    %v1041 = vlaneseq
    %v1042 = vshrl.u32 %v1041, 7
    %v1043 = vsub.s32 1, %v1042
    %v1044 = vrot.slane %v873, %v1043
    %v1045 = vlaneseq
    %v1046 = vshrl.u32 %v1045, 7
    %v1047 = vsub.s32 1, %v1046
    %v1048 = vrot.slane %v874, %v1047
    %v1049 = vmul.f32 %v1031, %v1036
    %v1050 = vmul.f32 %v1017, %v1040
    %v1051 = vmul.f32 %v1018, %v1044
    %v1052 = vmul.f32 %v1019, %v1048
    %v1053 = vmul.f32 %v1032, %v1036
    %v1054 = vmul.f32 %v1020, %v1040
    %v1055 = vmul.f32 %v1021, %v1044
    %v1056 = vmul.f32 %v1022, %v1048
    %1057 = vset.pattern.permute.xlu0 3
    %1058 = vperm.xlu0 %1057, %v40
    %v1059 = vpop.permute.xlu0 %1058
    %1061 = vset.pattern.permute.xlu0 3
    %1062 = vperm.xlu0 %1061, %v41
    %v1063 = vpop.permute.xlu0 %1062
    %v1065 = vmul.f32 %v1059, %v1049
    %v1066 = vmul.f32 %v1059, %v1050
    %v1067 = vmul.f32 %v1059, %v1051
    %v1068 = vmul.f32 %v1059, %v1052
    %v1069 = vmul.f32 %v1063, %v1053
    %v1070 = vmul.f32 %v1063, %v1054
    %v1071 = vmul.f32 %v1063, %v1055
    %v1072 = vmul.f32 %v1063, %v1056
    %v1073 = vadd.f32 %v990, %v1065
    %v1074 = vadd.f32 %v991, %v1066
    %v1075 = vadd.f32 %v992, %v1067
    %v1076 = vadd.f32 %v993, %v1068
    %v1077 = vadd.f32 %v994, %v1069
    %v1078 = vadd.f32 %v995, %v1070
    %v1079 = vadd.f32 %v996, %v1071
    %v1080 = vadd.f32 %v997, %v1072
    %1081 = vrot.lane.b32.xlu0 %v866, 7
    %v1082 = vpop.permute.xlu0 %1081
    %1083 = vrot.lane.b32.xlu0 %v870, 7
    %v1084 = vpop.permute.xlu0 %1083
    %1087 = vrot.lane.b32.xlu0 %v863, 7
    %v1088 = vpop.permute.xlu0 %1087
    %1089 = vrot.lane.b32.xlu0 %v864, 7
    %v1090 = vpop.permute.xlu0 %1089
    %1091 = vrot.lane.b32.xlu0 %v865, 7
    %v1092 = vpop.permute.xlu0 %1091
    %1093 = vrot.lane.b32.xlu0 %v867, 7
    %v1094 = vpop.permute.xlu0 %1093
    %1095 = vrot.lane.b32.xlu0 %v868, 7
    %v1096 = vpop.permute.xlu0 %1095
    %1097 = vrot.lane.b32.xlu0 %v869, 7
    %v1098 = vpop.permute.xlu0 %1097
    %vm1099 = vcmask 56320
    %v1100 = vsel %vm1099, %v1088, %v1090
    %v1101 = vsel %vm1099, %v1090, %v1092
    %v1102 = vsel %vm1099, %v1092, %v1082
    %v1103 = vsel %vm1099, %v1094, %v1096
    %v1104 = vsel %vm1099, %v1096, %v1098
    %v1105 = vsel %vm1099, %v1098, %v1084
    %v1114 = vsel %vm1099, %v1082, %v1088
    %v1115 = vsel %vm1099, %v1084, %v1094
    %v1116 = vlaneseq
    %v1117 = vshrl.u32 %v1116, 7
    %v1118 = vsub.s32 2, %v1117
    %v1119 = vrot.slane %v871, %v1118
    %v1120 = vlaneseq
    %v1121 = vshrl.u32 %v1120, 7
    %v1122 = vsub.s32 2, %v1121
    %v1123 = vrot.slane %v872, %v1122
    %v1124 = vlaneseq
    %v1125 = vshrl.u32 %v1124, 7
    %v1126 = vsub.s32 2, %v1125
    %v1127 = vrot.slane %v873, %v1126
    %v1128 = vlaneseq
    %v1129 = vshrl.u32 %v1128, 7
    %v1130 = vsub.s32 2, %v1129
    %v1131 = vrot.slane %v874, %v1130
    %v1132 = vmul.f32 %v1114, %v1119
    %v1133 = vmul.f32 %v1100, %v1123
    %v1134 = vmul.f32 %v1101, %v1127
    %v1135 = vmul.f32 %v1102, %v1131
    %v1136 = vmul.f32 %v1115, %v1119
    %v1137 = vmul.f32 %v1103, %v1123
    %v1138 = vmul.f32 %v1104, %v1127
    %v1139 = vmul.f32 %v1105, %v1131
    %1140 = vset.pattern.permute.xlu0 4
    %1141 = vperm.xlu0 %1140, %v40
    %v1142 = vpop.permute.xlu0 %1141
    %1144 = vset.pattern.permute.xlu0 4
    %1145 = vperm.xlu0 %1144, %v41
    %v1146 = vpop.permute.xlu0 %1145
    %v1148 = vmul.f32 %v1142, %v1132
    %v1149 = vmul.f32 %v1142, %v1133
    %v1150 = vmul.f32 %v1142, %v1134
    %v1151 = vmul.f32 %v1142, %v1135
    %v1152 = vmul.f32 %v1146, %v1136
    %v1153 = vmul.f32 %v1146, %v1137
    %v1154 = vmul.f32 %v1146, %v1138
    %v1155 = vmul.f32 %v1146, %v1139
    %v1156 = vadd.f32 %v1073, %v1148
    %v1157 = vadd.f32 %v1074, %v1149
    %v1158 = vadd.f32 %v1075, %v1150
    %v1159 = vadd.f32 %v1076, %v1151
    %v1160 = vadd.f32 %v1077, %v1152
    %v1161 = vadd.f32 %v1078, %v1153
    %v1162 = vadd.f32 %v1079, %v1154
    %v1163 = vadd.f32 %v1080, %v1155
    %1164 = vrot.lane.b32.xlu0 %v866, 1
    %v1165 = vpop.permute.xlu0 %1164
    %1166 = vrot.lane.b32.xlu0 %v870, 1
    %v1167 = vpop.permute.xlu0 %1166
    %1170 = vrot.lane.b32.xlu0 %v863, 1
    %v1171 = vpop.permute.xlu0 %1170
    %1172 = vrot.lane.b32.xlu0 %v864, 1
    %v1173 = vpop.permute.xlu0 %1172
    %1174 = vrot.lane.b32.xlu0 %v865, 1
    %v1175 = vpop.permute.xlu0 %1174
    %1176 = vrot.lane.b32.xlu0 %v867, 1
    %v1177 = vpop.permute.xlu0 %1176
    %1178 = vrot.lane.b32.xlu0 %v868, 1
    %v1179 = vpop.permute.xlu0 %1178
    %1180 = vrot.lane.b32.xlu0 %v869, 1
    %v1181 = vpop.permute.xlu0 %1180
    %vm1182 = vcmask 7168
    %v1183 = vsel %vm1182, %v1171, %v1173
    %v1184 = vsel %vm1182, %v1173, %v1175
    %v1185 = vsel %vm1182, %v1175, %v1165
    %v1186 = vsel %vm1182, %v1177, %v1179
    %v1187 = vsel %vm1182, %v1179, %v1181
    %v1188 = vsel %vm1182, %v1181, %v1167
    %v1197 = vsel %vm1182, %v1165, %v1171
    %v1198 = vsel %vm1182, %v1167, %v1177
    %v1199 = vlaneseq
    %v1200 = vshrl.u32 %v1199, 7
    %v1201 = vsub.s32 3, %v1200
    %v1202 = vrot.slane %v871, %v1201
    %v1203 = vlaneseq
    %v1204 = vshrl.u32 %v1203, 7
    %v1205 = vsub.s32 3, %v1204
    %v1206 = vrot.slane %v872, %v1205
    %v1207 = vlaneseq
    %v1208 = vshrl.u32 %v1207, 7
    %v1209 = vsub.s32 3, %v1208
    %v1210 = vrot.slane %v873, %v1209
    %v1211 = vlaneseq
    %v1212 = vshrl.u32 %v1211, 7
    %v1213 = vsub.s32 3, %v1212
    %v1214 = vrot.slane %v874, %v1213
    %v1215 = vmul.f32 %v1197, %v1202
    %v1216 = vmul.f32 %v1183, %v1206
    %v1217 = vmul.f32 %v1184, %v1210
    %v1218 = vmul.f32 %v1185, %v1214
    %v1219 = vmul.f32 %v1198, %v1202
    %v1220 = vmul.f32 %v1186, %v1206
    %v1221 = vmul.f32 %v1187, %v1210
    %v1222 = vmul.f32 %v1188, %v1214
    %1223 = vset.pattern.permute.xlu0 5
    %1224 = vperm.xlu0 %1223, %v40
    %v1225 = vpop.permute.xlu0 %1224
    %1227 = vset.pattern.permute.xlu0 5
    %1228 = vperm.xlu0 %1227, %v41
    %v1229 = vpop.permute.xlu0 %1228
    %v1231 = vmul.f32 %v1225, %v1215
    %v1232 = vmul.f32 %v1225, %v1216
    %v1233 = vmul.f32 %v1225, %v1217
    %v1234 = vmul.f32 %v1225, %v1218
    %v1235 = vmul.f32 %v1229, %v1219
    %v1236 = vmul.f32 %v1229, %v1220
    %v1237 = vmul.f32 %v1229, %v1221
    %v1238 = vmul.f32 %v1229, %v1222
    %v1239 = vadd.f32 %v1156, %v1231
    %v1240 = vadd.f32 %v1157, %v1232
    %v1241 = vadd.f32 %v1158, %v1233
    %v1242 = vadd.f32 %v1159, %v1234
    %v1243 = vadd.f32 %v1160, %v1235
    %v1244 = vadd.f32 %v1161, %v1236
    %v1245 = vadd.f32 %v1162, %v1237
    %v1246 = vadd.f32 %v1163, %v1238
    %1247 = vrot.lane.b32.xlu0 %v863, 127
    %v1248 = vpop.permute.xlu0 %1247
    %1249 = vrot.lane.b32.xlu0 %v864, 127
    %v1250 = vpop.permute.xlu0 %1249
    %1251 = vrot.lane.b32.xlu0 %v865, 127
    %v1252 = vpop.permute.xlu0 %1251
    %1253 = vrot.lane.b32.xlu0 %v866, 127
    %v1254 = vpop.permute.xlu0 %1253
    %1255 = vrot.lane.b32.xlu0 %v867, 127
    %v1256 = vpop.permute.xlu0 %1255
    %1257 = vrot.lane.b32.xlu0 %v868, 127
    %v1258 = vpop.permute.xlu0 %1257
    %1259 = vrot.lane.b32.xlu0 %v869, 127
    %v1260 = vpop.permute.xlu0 %1259
    %1261 = vrot.lane.b32.xlu0 %v870, 127
    %v1262 = vpop.permute.xlu0 %1261
    %vm1263 = vcmask 1039360
    %v1264 = vsel %vm1263, %v1248, %v1250
    %v1265 = vsel %vm1263, %v1250, %v1252
    %v1266 = vsel %vm1263, %v1252, %v1254
    %v1267 = vsel %vm1263, %v1256, %v1258
    %v1268 = vsel %vm1263, %v1258, %v1260
    %v1269 = vsel %vm1263, %v1260, %v1262
    %v1280 = vsel %vm1263, %v1254, %v1248
    %v1281 = vsel %vm1263, %v1262, %v1256
    %v1282 = vlaneseq
    %v1283 = vshrl.u32 %v1282, 7
    %v1284 = vsub.s32 4, %v1283
    %v1285 = vrot.slane %v871, %v1284
    %v1286 = vlaneseq
    %v1287 = vshrl.u32 %v1286, 7
    %v1288 = vsub.s32 4, %v1287
    %v1289 = vrot.slane %v872, %v1288
    %v1290 = vlaneseq
    %v1291 = vshrl.u32 %v1290, 7
    %v1292 = vsub.s32 4, %v1291
    %v1293 = vrot.slane %v873, %v1292
    %v1294 = vlaneseq
    %v1295 = vshrl.u32 %v1294, 7
    %v1296 = vsub.s32 4, %v1295
    %v1297 = vrot.slane %v874, %v1296
    %v1298 = vmul.f32 %v1264, %v1285
    %v1299 = vmul.f32 %v1265, %v1289
    %v1300 = vmul.f32 %v1266, %v1293
    %v1301 = vmul.f32 %v1280, %v1297
    %v1302 = vmul.f32 %v1267, %v1285
    %v1303 = vmul.f32 %v1268, %v1289
    %v1304 = vmul.f32 %v1269, %v1293
    %v1305 = vmul.f32 %v1281, %v1297
    %1306 = vset.pattern.permute.xlu0 6
    %1307 = vperm.xlu0 %1306, %v40
    %v1308 = vpop.permute.xlu0 %1307
    %1310 = vset.pattern.permute.xlu0 6
    %1311 = vperm.xlu0 %1310, %v41
    %v1312 = vpop.permute.xlu0 %1311
    %v1314 = vmul.f32 %v1308, %v1298
    %v1315 = vmul.f32 %v1308, %v1299
    %v1316 = vmul.f32 %v1308, %v1300
    %v1317 = vmul.f32 %v1308, %v1301
    %v1318 = vmul.f32 %v1312, %v1302
    %v1319 = vmul.f32 %v1312, %v1303
    %v1320 = vmul.f32 %v1312, %v1304
    %v1321 = vmul.f32 %v1312, %v1305
    %v1322 = vadd.f32 %v1239, %v1314
    %v1323 = vadd.f32 %v1240, %v1315
    %v1324 = vadd.f32 %v1241, %v1316
    %v1325 = vadd.f32 %v1242, %v1317
    %v1326 = vadd.f32 %v1243, %v1318
    %v1327 = vadd.f32 %v1244, %v1319
    %v1328 = vadd.f32 %v1245, %v1320
    %v1329 = vadd.f32 %v1246, %v1321
    %1330 = vrot.lane.b32.xlu0 %v863, 121
    %v1331 = vpop.permute.xlu0 %1330
    %1332 = vrot.lane.b32.xlu0 %v864, 121
    %v1333 = vpop.permute.xlu0 %1332
    %1334 = vrot.lane.b32.xlu0 %v865, 121
    %v1335 = vpop.permute.xlu0 %1334
    %1336 = vrot.lane.b32.xlu0 %v866, 121
    %v1337 = vpop.permute.xlu0 %1336
    %1338 = vrot.lane.b32.xlu0 %v867, 121
    %v1339 = vpop.permute.xlu0 %1338
    %1340 = vrot.lane.b32.xlu0 %v868, 121
    %v1341 = vpop.permute.xlu0 %1340
    %1342 = vrot.lane.b32.xlu0 %v869, 121
    %v1343 = vpop.permute.xlu0 %1342
    %1344 = vrot.lane.b32.xlu0 %v870, 121
    %v1345 = vpop.permute.xlu0 %1344
    %vm1346 = vcmask 990208
    %v1347 = vsel %vm1346, %v1331, %v1333
    %v1348 = vsel %vm1346, %v1333, %v1335
    %v1349 = vsel %vm1346, %v1335, %v1337
    %v1350 = vsel %vm1346, %v1339, %v1341
    %v1351 = vsel %vm1346, %v1341, %v1343
    %v1352 = vsel %vm1346, %v1343, %v1345
    %v1363 = vsel %vm1346, %v1337, %v1331
    %v1364 = vsel %vm1346, %v1345, %v1339
    %v1365 = vlaneseq
    %v1366 = vshrl.u32 %v1365, 7
    %v1367 = vsub.s32 5, %v1366
    %v1368 = vrot.slane %v871, %v1367
    %v1369 = vlaneseq
    %v1370 = vshrl.u32 %v1369, 7
    %v1371 = vsub.s32 5, %v1370
    %v1372 = vrot.slane %v872, %v1371
    %v1373 = vlaneseq
    %v1374 = vshrl.u32 %v1373, 7
    %v1375 = vsub.s32 5, %v1374
    %v1376 = vrot.slane %v873, %v1375
    %v1377 = vlaneseq
    %v1378 = vshrl.u32 %v1377, 7
    %v1379 = vsub.s32 5, %v1378
    %v1380 = vrot.slane %v874, %v1379
    %v1381 = vmul.f32 %v1347, %v1368
    %v1382 = vmul.f32 %v1348, %v1372
    %v1383 = vmul.f32 %v1349, %v1376
    %v1384 = vmul.f32 %v1363, %v1380
    %v1385 = vmul.f32 %v1350, %v1368
    %v1386 = vmul.f32 %v1351, %v1372
    %v1387 = vmul.f32 %v1352, %v1376
    %v1388 = vmul.f32 %v1364, %v1380
    %1389 = vset.pattern.permute.xlu0 7
    %1390 = vperm.xlu0 %1389, %v40
    %v1391 = vpop.permute.xlu0 %1390
    %1393 = vset.pattern.permute.xlu0 7
    %1394 = vperm.xlu0 %1393, %v41
    %v1395 = vpop.permute.xlu0 %1394
    %v1397 = vmul.f32 %v1391, %v1381
    %v1398 = vmul.f32 %v1391, %v1382
    %v1399 = vmul.f32 %v1391, %v1383
    %v1400 = vmul.f32 %v1391, %v1384
    %v1401 = vmul.f32 %v1395, %v1385
    %v1402 = vmul.f32 %v1395, %v1386
    %v1403 = vmul.f32 %v1395, %v1387
    %v1404 = vmul.f32 %v1395, %v1388
    %v1405 = vadd.f32 %v1322, %v1397
    %v1406 = vadd.f32 %v1323, %v1398
    %v1407 = vadd.f32 %v1324, %v1399
    %v1408 = vadd.f32 %v1325, %v1400
    %v1409 = vadd.f32 %v1326, %v1401
    %v1410 = vadd.f32 %v1327, %v1402
    %v1411 = vadd.f32 %v1328, %v1403
    %v1412 = vadd.f32 %v1329, %v1404
    %1413 = vrot.lane.b32.xlu0 %v863, 120
    %v1414 = vpop.permute.xlu0 %1413
    %1415 = vrot.lane.b32.xlu0 %v864, 120
    %v1416 = vpop.permute.xlu0 %1415
    %1417 = vrot.lane.b32.xlu0 %v865, 120
    %v1418 = vpop.permute.xlu0 %1417
    %1419 = vrot.lane.b32.xlu0 %v866, 120
    %v1420 = vpop.permute.xlu0 %1419
    %1421 = vrot.lane.b32.xlu0 %v867, 120
    %v1422 = vpop.permute.xlu0 %1421
    %1423 = vrot.lane.b32.xlu0 %v868, 120
    %v1424 = vpop.permute.xlu0 %1423
    %1425 = vrot.lane.b32.xlu0 %v869, 120
    %v1426 = vpop.permute.xlu0 %1425
    %1427 = vrot.lane.b32.xlu0 %v870, 120
    %v1428 = vpop.permute.xlu0 %1427
    %vm1429 = vcmask 982016
    %v1430 = vsel %vm1429, %v1414, %v1416
    %v1431 = vsel %vm1429, %v1416, %v1418
    %v1432 = vsel %vm1429, %v1418, %v1420
    %v1433 = vsel %vm1429, %v1422, %v1424
    %v1434 = vsel %vm1429, %v1424, %v1426
    %v1435 = vsel %vm1429, %v1426, %v1428
    %v1446 = vsel %vm1429, %v1420, %v1414
    %v1447 = vsel %vm1429, %v1428, %v1422
    %v1448 = vlaneseq
    %v1449 = vshrl.u32 %v1448, 7
    %v1450 = vsub.s32 6, %v1449
    %v1451 = vrot.slane %v871, %v1450
    %v1452 = vlaneseq
    %v1453 = vshrl.u32 %v1452, 7
    %v1454 = vsub.s32 6, %v1453
    %v1455 = vrot.slane %v872, %v1454
    %v1456 = vlaneseq
    %v1457 = vshrl.u32 %v1456, 7
    %v1458 = vsub.s32 6, %v1457
    %v1459 = vrot.slane %v873, %v1458
    %v1460 = vlaneseq
    %v1461 = vshrl.u32 %v1460, 7
    %v1462 = vsub.s32 6, %v1461
    %v1463 = vrot.slane %v874, %v1462
    %v1464 = vmul.f32 %v1430, %v1451
    %v1465 = vmul.f32 %v1431, %v1455
    %v1466 = vmul.f32 %v1432, %v1459
    %v1467 = vmul.f32 %v1446, %v1463
    %v1468 = vmul.f32 %v1433, %v1451
    %v1469 = vmul.f32 %v1434, %v1455
    %v1470 = vmul.f32 %v1435, %v1459
    %v1471 = vmul.f32 %v1447, %v1463
    %1472 = vset.pattern.permute.xlu0 8
    %1473 = vperm.xlu0 %1472, %v40
    %v1474 = vpop.permute.xlu0 %1473
    %1476 = vset.pattern.permute.xlu0 8
    %1477 = vperm.xlu0 %1476, %v41
    %v1478 = vpop.permute.xlu0 %1477
    %v1480 = vmul.f32 %v1474, %v1464
    %v1481 = vmul.f32 %v1474, %v1465
    %v1482 = vmul.f32 %v1474, %v1466
    %v1483 = vmul.f32 %v1474, %v1467
    %v1484 = vmul.f32 %v1478, %v1468
    %v1485 = vmul.f32 %v1478, %v1469
    %v1486 = vmul.f32 %v1478, %v1470
    %v1487 = vmul.f32 %v1478, %v1471
    %v1488 = vadd.f32 %v1405, %v1480
    %v1489 = vadd.f32 %v1406, %v1481
    %v1490 = vadd.f32 %v1407, %v1482
    %v1491 = vadd.f32 %v1408, %v1483
    %v1492 = vadd.f32 %v1409, %v1484
    %v1493 = vadd.f32 %v1410, %v1485
    %v1494 = vadd.f32 %v1411, %v1486
    %v1495 = vadd.f32 %v1412, %v1487
    %1496 = vrot.lane.b32.xlu0 %v863, 119
    %v1497 = vpop.permute.xlu0 %1496
    %1498 = vrot.lane.b32.xlu0 %v864, 119
    %v1499 = vpop.permute.xlu0 %1498
    %1500 = vrot.lane.b32.xlu0 %v865, 119
    %v1501 = vpop.permute.xlu0 %1500
    %1502 = vrot.lane.b32.xlu0 %v866, 119
    %v1503 = vpop.permute.xlu0 %1502
    %1504 = vrot.lane.b32.xlu0 %v867, 119
    %v1505 = vpop.permute.xlu0 %1504
    %1506 = vrot.lane.b32.xlu0 %v868, 119
    %v1507 = vpop.permute.xlu0 %1506
    %1508 = vrot.lane.b32.xlu0 %v869, 119
    %v1509 = vpop.permute.xlu0 %1508
    %1510 = vrot.lane.b32.xlu0 %v870, 119
    %v1511 = vpop.permute.xlu0 %1510
    %vm1512 = vcmask 973824
    %v1513 = vsel %vm1512, %v1497, %v1499
    %v1514 = vsel %vm1512, %v1499, %v1501
    %v1515 = vsel %vm1512, %v1501, %v1503
    %v1516 = vsel %vm1512, %v1505, %v1507
    %v1517 = vsel %vm1512, %v1507, %v1509
    %v1518 = vsel %vm1512, %v1509, %v1511
    %v1529 = vsel %vm1512, %v1503, %v1497
    %v1530 = vsel %vm1512, %v1511, %v1505
    %v1531 = vlaneseq
    %v1532 = vshrl.u32 %v1531, 7
    %v1533 = vsub.s32 7, %v1532
    %v1534 = vrot.slane %v871, %v1533
    %v1535 = vlaneseq
    %v1536 = vshrl.u32 %v1535, 7
    %v1537 = vsub.s32 7, %v1536
    %v1538 = vrot.slane %v872, %v1537
    %v1539 = vlaneseq
    %v1540 = vshrl.u32 %v1539, 7
    %v1541 = vsub.s32 7, %v1540
    %v1542 = vrot.slane %v873, %v1541
    %v1543 = vlaneseq
    %v1544 = vshrl.u32 %v1543, 7
    %v1545 = vsub.s32 7, %v1544
    %v1546 = vrot.slane %v874, %v1545
    %v1547 = vmul.f32 %v1513, %v1534
    %v1548 = vmul.f32 %v1514, %v1538
    %v1549 = vmul.f32 %v1515, %v1542
    %v1550 = vmul.f32 %v1529, %v1546
    %v1551 = vmul.f32 %v1516, %v1534
    %v1552 = vmul.f32 %v1517, %v1538
    %v1553 = vmul.f32 %v1518, %v1542
    %v1554 = vmul.f32 %v1530, %v1546
    %1555 = vset.pattern.permute.xlu0 9
    %1556 = vperm.xlu0 %1555, %v40
    %v1557 = vpop.permute.xlu0 %1556
    %1559 = vset.pattern.permute.xlu0 9
    %1560 = vperm.xlu0 %1559, %v41
    %v1561 = vpop.permute.xlu0 %1560
    %v1563 = vmul.f32 %v1557, %v1547
    %v1564 = vmul.f32 %v1557, %v1548
    %v1565 = vmul.f32 %v1557, %v1549
    %v1566 = vmul.f32 %v1557, %v1550
    %v1567 = vmul.f32 %v1561, %v1551
    %v1568 = vmul.f32 %v1561, %v1552
    %v1569 = vmul.f32 %v1561, %v1553
    %v1570 = vmul.f32 %v1561, %v1554
    %v1571 = vadd.f32 %v1488, %v1563
    %v1572 = vadd.f32 %v1489, %v1564
    %v1573 = vadd.f32 %v1490, %v1565
    %v1574 = vadd.f32 %v1491, %v1566
    %v1575 = vadd.f32 %v1492, %v1567
    %v1576 = vadd.f32 %v1493, %v1568
    %v1577 = vadd.f32 %v1494, %v1569
    %v1578 = vadd.f32 %v1495, %v1570
    %v1579 = vld [vmem:[%s7] sm:$0xf]
    %v1580 = vld [vmem:[%s7 + $0x4] sm:$0xf]
    %v1581 = vld [vmem:[%s7 + $0x8] sm:$0xf]
    %v1582 = vld [vmem:[%s7 + $0xc] sm:$0xf]
    %v1583 = vld [vmem:[%s7 + $0x10] sm:$0xf]
    %v1584 = vld [vmem:[%s7 + $0x14] sm:$0xf]
    %v1585 = vld [vmem:[%s7 + $0x18] sm:$0xf]
    %v1586 = vld [vmem:[%s7 + $0x1c] sm:$0xf]
    %v1587 = vpack.c.bf16 %v1575, %v1571
    %v1588 = vpack.c.bf16 %v1576, %v1572
    %v1589 = vpack.c.bf16 %v1577, %v1573
    %v1590 = vpack.c.bf16 %v1578, %v1574
    %v1599 = vunpack.c.l.b16 %v1579
    %v1600 = vunpack.c.l.b16 %v1580
    %v1601 = vunpack.c.l.b16 %v1581
    %v1602 = vunpack.c.l.b16 %v1582
    %v1603 = vunpack.c.l.b16 %v1583
    %v1604 = vunpack.c.l.b16 %v1584
    %v1605 = vunpack.c.l.b16 %v1585
    %v1606 = vunpack.c.l.b16 %v1586
    %v1607 = vpack.c.b16 %v1600, %v1599
    %v1608 = vpack.c.b16 %v1602, %v1601
    %v1609 = vpack.c.b16 %v1604, %v1603
    %v1610 = vpack.c.b16 %v1606, %v1605
    %v1612 = vsel %vm502, %v1607, 0
    %v1615 = vsel %vm502, %v1608, 0
    %v1618 = vsel %vm502, %v1609, 0
    %v1621 = vsel %vm502, %v1610, 0
    %1623 = vmatprep.subr.bf16.mxu0 %v1588
    %1624 = vmatpush1.bf16.msra.mxu0 %v1587
    %1625 = vmatprep.subr.bf16.mxu0 0
    %1626 = vmatpush1.bf16.msra.mxu0 0
    %1627 = vmatprep.subr.bf16.mxu0 0
    %1628 = vmatpush1.bf16.msra.mxu0 0
    %1629 = vmatprep.subr.bf16.mxu0 0
    %1630 = vmatpush1.bf16.msra.mxu0 0
    %1631 = vmatprep.subr.bf16.mxu0 0
    %1632 = vmatpush1.bf16.msra.mxu0 0
    %1633 = vmatprep.subr.bf16.mxu0 0
    %1634 = vmatpush1.bf16.msra.mxu0 0
    %1635 = vmatprep.subr.bf16.mxu0 0
    %1636 = vmatpush1.bf16.msra.mxu0 0
    %1637 = vmatprep.subr.bf16.mxu0 0
    %1638 = vmatpush1.bf16.msra.mxu0 0
    %1639 = vmatprep.subr.bf16.mxu0 0
    %1640 = vmatpush1.bf16.msra.mxu0 0
    %1641 = vmatprep.subr.bf16.mxu0 0
    %1642 = vmatpush1.bf16.msra.mxu0 0
    %1643 = vmatprep.subr.bf16.mxu0 0
    %1644 = vmatpush1.bf16.msra.mxu0 0
    %1645 = vmatprep.subr.bf16.mxu0 0
    %1646 = vmatpush1.bf16.msra.mxu0 0
    %1647 = vmatprep.subr.bf16.mxu0 0
    %1648 = vmatpush1.bf16.msra.mxu0 0
    %1649 = vmatprep.subr.bf16.mxu0 0
    %1650 = vmatpush1.bf16.msra.mxu0 0
    %1651 = vmatprep.subr.bf16.mxu0 0
    %1652 = vmatpush1.bf16.msra.mxu0 0
    %1653 = vmatprep.subr.bf16.mxu0 0
    %1654 = vmatpush1.bf16.msra.mxu0 0
    %1655 = vmatprep.mubr.bf16.mxu0 0
    %1656 = vmatmul.mubr.bf16.gmra.mrb[0].mxu0 %v1612
    %v1657 = vpop.f32.mrb[0].mxu0
    %v1658 = vadd.f32 0.0, %v1657
    %v1659 = vpop.f32.mrb[0].mxu0
    %v1660 = vadd.f32 0.0, %v1659
    %v1661 = vpop.f32.mrb[0].mxu0
    %v1662 = vadd.f32 0.0, %v1661
    %v1663 = vpop.f32.mrb[0].mxu0
    %v1664 = vadd.f32 0.0, %v1663
    %1665 = vmatprep.mubr.bf16.mxu0 0
    %1666 = vmatmul.mubr.bf16.gmra.mrb[0].mxu0 %v1615
    %v1667 = vpop.f32.mrb[0].mxu0
    %v1668 = vadd.f32 0.0, %v1667
    %v1669 = vpop.f32.mrb[0].mxu0
    %v1670 = vadd.f32 0.0, %v1669
    %v1671 = vpop.f32.mrb[0].mxu0
    %v1672 = vadd.f32 0.0, %v1671
    %v1673 = vpop.f32.mrb[0].mxu0
    %v1674 = vadd.f32 0.0, %v1673
    %1675 = vmatprep.mubr.bf16.mxu0 0
    %1676 = vmatmul.mubr.bf16.gmra.mrb[0].mxu0 %v1618
    %v1677 = vpop.f32.mrb[0].mxu0
    %v1678 = vadd.f32 0.0, %v1677
    %v1679 = vpop.f32.mrb[0].mxu0
    %v1680 = vadd.f32 0.0, %v1679
    %v1681 = vpop.f32.mrb[0].mxu0
    %v1682 = vadd.f32 0.0, %v1681
    %v1683 = vpop.f32.mrb[0].mxu0
    %v1684 = vadd.f32 0.0, %v1683
    %1685 = vmatprep.mubr.bf16.mxu0 0
    %1686 = vmatmul.mubr.bf16.gmra.mrb[0].mxu0 %v1621
    %v1687 = vpop.f32.mrb[0].mxu0
    %v1688 = vadd.f32 0.0, %v1687
    %v1689 = vpop.f32.mrb[0].mxu0
    %v1690 = vadd.f32 0.0, %v1689
    %v1691 = vpop.f32.mrb[0].mxu0
    %v1692 = vadd.f32 0.0, %v1691
    %v1693 = vpop.f32.mrb[0].mxu0
    %v1694 = vadd.f32 0.0, %v1693
    %1695 = vdwg.mxu0
    %1696 = vmatprep.subr.bf16.mxu0 %v1590
    %1697 = vmatpush1.bf16.msra.mxu0 %v1589
    %1698 = vmatprep.subr.bf16.mxu0 0
    %1699 = vmatpush1.bf16.msra.mxu0 0
    %1700 = vmatprep.subr.bf16.mxu0 0
    %1701 = vmatpush1.bf16.msra.mxu0 0
    %1702 = vmatprep.subr.bf16.mxu0 0
    %1703 = vmatpush1.bf16.msra.mxu0 0
    %1704 = vmatprep.subr.bf16.mxu0 0
    %1705 = vmatpush1.bf16.msra.mxu0 0
    %1706 = vmatprep.subr.bf16.mxu0 0
    %1707 = vmatpush1.bf16.msra.mxu0 0
    %1708 = vmatprep.subr.bf16.mxu0 0
    %1709 = vmatpush1.bf16.msra.mxu0 0
    %1710 = vmatprep.subr.bf16.mxu0 0
    %1711 = vmatpush1.bf16.msra.mxu0 0
    %1712 = vmatprep.subr.bf16.mxu0 0
    %1713 = vmatpush1.bf16.msra.mxu0 0
    %1714 = vmatprep.subr.bf16.mxu0 0
    %1715 = vmatpush1.bf16.msra.mxu0 0
    %1716 = vmatprep.subr.bf16.mxu0 0
    %1717 = vmatpush1.bf16.msra.mxu0 0
    %1718 = vmatprep.subr.bf16.mxu0 0
    %1719 = vmatpush1.bf16.msra.mxu0 0
    %1720 = vmatprep.subr.bf16.mxu0 0
    %1721 = vmatpush1.bf16.msra.mxu0 0
    %1722 = vmatprep.subr.bf16.mxu0 0
    %1723 = vmatpush1.bf16.msra.mxu0 0
    %1724 = vmatprep.subr.bf16.mxu0 0
    %1725 = vmatpush1.bf16.msra.mxu0 0
    %1726 = vmatprep.subr.bf16.mxu0 0
    %1727 = vmatpush1.bf16.msra.mxu0 0
    %1728 = vmatprep.mubr.bf16.mxu0 0
    %1729 = vmatmul.mubr.bf16.gmra.mrb[0].mxu0 %v1612
    %v1730 = vpop.f32.mrb[0].mxu0
    %v1731 = vadd.f32 0.0, %v1730
    %v1732 = vpop.f32.mrb[0].mxu0
    %v1733 = vadd.f32 0.0, %v1732
    %v1734 = vpop.f32.mrb[0].mxu0
    %v1735 = vadd.f32 0.0, %v1734
    %v1736 = vpop.f32.mrb[0].mxu0
    %v1737 = vadd.f32 0.0, %v1736
    %1738 = vmatprep.mubr.bf16.mxu0 0
    %1739 = vmatmul.mubr.bf16.gmra.mrb[0].mxu0 %v1615
    %v1740 = vpop.f32.mrb[0].mxu0
    %v1741 = vadd.f32 0.0, %v1740
    %v1742 = vpop.f32.mrb[0].mxu0
    %v1743 = vadd.f32 0.0, %v1742
    %v1744 = vpop.f32.mrb[0].mxu0
    %v1745 = vadd.f32 0.0, %v1744
    %v1746 = vpop.f32.mrb[0].mxu0
    %v1747 = vadd.f32 0.0, %v1746
    %1748 = vmatprep.mubr.bf16.mxu0 0
    %1749 = vmatmul.mubr.bf16.gmra.mrb[0].mxu0 %v1618
    %v1750 = vpop.f32.mrb[0].mxu0
    %v1751 = vadd.f32 0.0, %v1750
    %v1752 = vpop.f32.mrb[0].mxu0
    %v1753 = vadd.f32 0.0, %v1752
    %v1754 = vpop.f32.mrb[0].mxu0
    %v1755 = vadd.f32 0.0, %v1754
    %v1756 = vpop.f32.mrb[0].mxu0
    %v1757 = vadd.f32 0.0, %v1756
    %1758 = vmatprep.mubr.bf16.mxu0 0
    %1759 = vmatmul.mubr.bf16.gmra.mrb[0].mxu0 %v1621
    %v1760 = vpop.f32.mrb[0].mxu0
    %v1761 = vadd.f32 0.0, %v1760
    %v1762 = vpop.f32.mrb[0].mxu0
    %v1763 = vadd.f32 0.0, %v1762
    %v1764 = vpop.f32.mrb[0].mxu0
    %v1765 = vadd.f32 0.0, %v1764
    %v1766 = vpop.f32.mrb[0].mxu0
    %v1767 = vadd.f32 0.0, %v1766
    %1768 = vdwg.mxu0
    %v1769 = vld [vmem:[%s8] sm:$0xff]
    %v1770 = vld [vmem:[%s8 + $0x8] sm:$0xff]
    %v1771 = vld [vmem:[%s8 + $0x10] sm:$0xff]
    %v1772 = vld [vmem:[%s8 + $0x18] sm:$0xff]
    %1774 = vset.pattern.permute.xlu0 0
    %1775 = vperm.xlu0 %1774, %v1769
    %v1776 = vpop.permute.xlu0 %1775
    %1779 = vset.pattern.permute.xlu0 0
    %1780 = vperm.xlu0 %1779, %v1770
    %v1781 = vpop.permute.xlu0 %1780
    %1784 = vset.pattern.permute.xlu0 0
    %1785 = vperm.xlu0 %1784, %v1771
    %v1786 = vpop.permute.xlu0 %1785
    %1789 = vset.pattern.permute.xlu0 0
    %1790 = vperm.xlu0 %1789, %v1772
    %v1791 = vpop.permute.xlu0 %1790
    %v1793 = vadd.f32 %v1658, %v1776
    %v1794 = vadd.f32 %v1660, %v1776
    %v1795 = vadd.f32 %v1731, %v1776
    %v1796 = vadd.f32 %v1733, %v1776
    %v1797 = vadd.f32 %v1662, %v1781
    %v1798 = vadd.f32 %v1664, %v1781
    %v1799 = vadd.f32 %v1735, %v1781
    %v1800 = vadd.f32 %v1737, %v1781
    %v1801 = vadd.f32 %v1668, %v1786
    %v1802 = vadd.f32 %v1670, %v1786
    %v1803 = vadd.f32 %v1741, %v1786
    %v1804 = vadd.f32 %v1743, %v1786
    %v1805 = vadd.f32 %v1672, %v1791
    %v1806 = vadd.f32 %v1674, %v1791
    %v1807 = vadd.f32 %v1745, %v1791
    %v1808 = vadd.f32 %v1747, %v1791
    %v1809 = vmul.f32 %v1793, 0.5
    %v1810 = vmul.f32 %v1794, 0.5
    %v1811 = vmul.f32 %v1795, 0.5
    %v1812 = vmul.f32 %v1796, 0.5
    %v1813 = vmul.f32 %v1797, 0.5
    %v1814 = vmul.f32 %v1798, 0.5
    %v1815 = vmul.f32 %v1799, 0.5
    %v1816 = vmul.f32 %v1800, 0.5
    %v1817 = vmul.f32 %v1801, 0.5
    %v1818 = vmul.f32 %v1802, 0.5
    %v1819 = vmul.f32 %v1803, 0.5
    %v1820 = vmul.f32 %v1804, 0.5
    %v1821 = vmul.f32 %v1805, 0.5
    %v1822 = vmul.f32 %v1806, 0.5
    %v1823 = vmul.f32 %v1807, 0.5
    %v1824 = vmul.f32 %v1808, 0.5
    %v1825 = vmul.f32 %v1793, 0.70710677
    %v1826 = vmul.f32 %v1794, 0.70710677
    %v1827 = vmul.f32 %v1795, 0.70710677
    %v1828 = vmul.f32 %v1796, 0.70710677
    %v1829 = vmul.f32 %v1797, 0.70710677
    %v1830 = vmul.f32 %v1798, 0.70710677
    %v1831 = vmul.f32 %v1799, 0.70710677
    %v1832 = vmul.f32 %v1800, 0.70710677
    %v1833 = vmul.f32 %v1801, 0.70710677
    %v1834 = vmul.f32 %v1802, 0.70710677
    %v1835 = vmul.f32 %v1803, 0.70710677
    %v1836 = vmul.f32 %v1804, 0.70710677
    %v1837 = vmul.f32 %v1805, 0.70710677
    %v1838 = vmul.f32 %v1806, 0.70710677
    %v1839 = vmul.f32 %v1807, 0.70710677
    %v1840 = vmul.f32 %v1808, 0.70710677
    %v1841 = vand.u32 2147483647, %v1825
    %v1842 = vand.u32 2147483647, %v1826
    %v1843 = vand.u32 2147483647, %v1827
    %v1844 = vand.u32 2147483647, %v1828
    %v1845 = vand.u32 2147483647, %v1829
    %v1846 = vand.u32 2147483647, %v1830
    %v1847 = vand.u32 2147483647, %v1831
    %v1848 = vand.u32 2147483647, %v1832
    %v1849 = vand.u32 2147483647, %v1833
    %v1850 = vand.u32 2147483647, %v1834
    %v1851 = vand.u32 2147483647, %v1835
    %v1852 = vand.u32 2147483647, %v1836
    %v1853 = vand.u32 2147483647, %v1837
    %v1854 = vand.u32 2147483647, %v1838
    %v1855 = vand.u32 2147483647, %v1839
    %v1856 = vand.u32 2147483647, %v1840
    %v1857 = vmul.f32 %v1841, 0.3275911
    %v1858 = vmul.f32 %v1842, 0.3275911
    %v1859 = vmul.f32 %v1843, 0.3275911
    %v1860 = vmul.f32 %v1844, 0.3275911
    %v1861 = vmul.f32 %v1845, 0.3275911
    %v1862 = vmul.f32 %v1846, 0.3275911
    %v1863 = vmul.f32 %v1847, 0.3275911
    %v1864 = vmul.f32 %v1848, 0.3275911
    %v1865 = vmul.f32 %v1849, 0.3275911
    %v1866 = vmul.f32 %v1850, 0.3275911
    %v1867 = vmul.f32 %v1851, 0.3275911
    %v1868 = vmul.f32 %v1852, 0.3275911
    %v1869 = vmul.f32 %v1853, 0.3275911
    %v1870 = vmul.f32 %v1854, 0.3275911
    %v1871 = vmul.f32 %v1855, 0.3275911
    %v1872 = vmul.f32 %v1856, 0.3275911
    %v1873 = vadd.f32 %v1857, 1.0
    %v1874 = vadd.f32 %v1858, 1.0
    %v1875 = vadd.f32 %v1859, 1.0
    %v1876 = vadd.f32 %v1860, 1.0
    %v1877 = vadd.f32 %v1861, 1.0
    %v1878 = vadd.f32 %v1862, 1.0
    %v1879 = vadd.f32 %v1863, 1.0
    %v1880 = vadd.f32 %v1864, 1.0
    %v1881 = vadd.f32 %v1865, 1.0
    %v1882 = vadd.f32 %v1866, 1.0
    %v1883 = vadd.f32 %v1867, 1.0
    %v1884 = vadd.f32 %v1868, 1.0
    %v1885 = vadd.f32 %v1869, 1.0
    %v1886 = vadd.f32 %v1870, 1.0
    %v1887 = vadd.f32 %v1871, 1.0
    %v1888 = vadd.f32 %v1872, 1.0
    %v1889 = vrcp.pop %v1873
    %v1890 = vrcp.pop %v1874
    %v1891 = vrcp.pop %v1875
    %v1892 = vrcp.pop %v1876
    %v1893 = vrcp.pop %v1877
    %v1894 = vrcp.pop %v1878
    %v1895 = vrcp.pop %v1879
    %v1896 = vrcp.pop %v1880
    %v1897 = vrcp.pop %v1881
    %v1898 = vrcp.pop %v1882
    %v1899 = vrcp.pop %v1883
    %v1900 = vrcp.pop %v1884
    %v1901 = vrcp.pop %v1885
    %v1902 = vrcp.pop %v1886
    %v1903 = vrcp.pop %v1887
    %v1904 = vrcp.pop %v1888
    %v1905 = vmul.f32 %v1889, 1.0614054
    %v1906 = vmul.f32 %v1890, 1.0614054
    %v1907 = vmul.f32 %v1891, 1.0614054
    %v1908 = vmul.f32 %v1892, 1.0614054
    %v1909 = vmul.f32 %v1893, 1.0614054
    %v1910 = vmul.f32 %v1894, 1.0614054
    %v1911 = vmul.f32 %v1895, 1.0614054
    %v1912 = vmul.f32 %v1896, 1.0614054
    %v1913 = vmul.f32 %v1897, 1.0614054
    %v1914 = vmul.f32 %v1898, 1.0614054
    %v1915 = vmul.f32 %v1899, 1.0614054
    %v1916 = vmul.f32 %v1900, 1.0614054
    %v1917 = vmul.f32 %v1901, 1.0614054
    %v1918 = vmul.f32 %v1902, 1.0614054
    %v1919 = vmul.f32 %v1903, 1.0614054
    %v1920 = vmul.f32 %v1904, 1.0614054
    %v1921 = vadd.f32 %v1905, -1.4531521
    %v1922 = vadd.f32 %v1906, -1.4531521
    %v1923 = vadd.f32 %v1907, -1.4531521
    %v1924 = vadd.f32 %v1908, -1.4531521
    %v1925 = vadd.f32 %v1909, -1.4531521
    %v1926 = vadd.f32 %v1910, -1.4531521
    %v1927 = vadd.f32 %v1911, -1.4531521
    %v1928 = vadd.f32 %v1912, -1.4531521
    %v1929 = vadd.f32 %v1913, -1.4531521
    %v1930 = vadd.f32 %v1914, -1.4531521
    %v1931 = vadd.f32 %v1915, -1.4531521
    %v1932 = vadd.f32 %v1916, -1.4531521
    %v1933 = vadd.f32 %v1917, -1.4531521
    %v1934 = vadd.f32 %v1918, -1.4531521
    %v1935 = vadd.f32 %v1919, -1.4531521
    %v1936 = vadd.f32 %v1920, -1.4531521
    %v1937 = vmul.f32 %v1921, %v1889
    %v1938 = vmul.f32 %v1922, %v1890
    %v1939 = vmul.f32 %v1923, %v1891
    %v1940 = vmul.f32 %v1924, %v1892
    %v1941 = vmul.f32 %v1925, %v1893
    %v1942 = vmul.f32 %v1926, %v1894
    %v1943 = vmul.f32 %v1927, %v1895
    %v1944 = vmul.f32 %v1928, %v1896
    %v1945 = vmul.f32 %v1929, %v1897
    %v1946 = vmul.f32 %v1930, %v1898
    %v1947 = vmul.f32 %v1931, %v1899
    %v1948 = vmul.f32 %v1932, %v1900
    %v1949 = vmul.f32 %v1933, %v1901
    %v1950 = vmul.f32 %v1934, %v1902
    %v1951 = vmul.f32 %v1935, %v1903
    %v1952 = vmul.f32 %v1936, %v1904
    %v1953 = vadd.f32 %v1937, 1.4214138
    %v1954 = vadd.f32 %v1938, 1.4214138
    %v1955 = vadd.f32 %v1939, 1.4214138
    %v1956 = vadd.f32 %v1940, 1.4214138
    %v1957 = vadd.f32 %v1941, 1.4214138
    %v1958 = vadd.f32 %v1942, 1.4214138
    %v1959 = vadd.f32 %v1943, 1.4214138
    %v1960 = vadd.f32 %v1944, 1.4214138
    %v1961 = vadd.f32 %v1945, 1.4214138
    %v1962 = vadd.f32 %v1946, 1.4214138
    %v1963 = vadd.f32 %v1947, 1.4214138
    %v1964 = vadd.f32 %v1948, 1.4214138
    %v1965 = vadd.f32 %v1949, 1.4214138
    %v1966 = vadd.f32 %v1950, 1.4214138
    %v1967 = vadd.f32 %v1951, 1.4214138
    %v1968 = vadd.f32 %v1952, 1.4214138
    %v1969 = vmul.f32 %v1953, %v1889
    %v1970 = vmul.f32 %v1954, %v1890
    %v1971 = vmul.f32 %v1955, %v1891
    %v1972 = vmul.f32 %v1956, %v1892
    %v1973 = vmul.f32 %v1957, %v1893
    %v1974 = vmul.f32 %v1958, %v1894
    %v1975 = vmul.f32 %v1959, %v1895
    %v1976 = vmul.f32 %v1960, %v1896
    %v1977 = vmul.f32 %v1961, %v1897
    %v1978 = vmul.f32 %v1962, %v1898
    %v1979 = vmul.f32 %v1963, %v1899
    %v1980 = vmul.f32 %v1964, %v1900
    %v1981 = vmul.f32 %v1965, %v1901
    %v1982 = vmul.f32 %v1966, %v1902
    %v1983 = vmul.f32 %v1967, %v1903
    %v1984 = vmul.f32 %v1968, %v1904
    %v1985 = vadd.f32 %v1969, -0.28449672
    %v1986 = vadd.f32 %v1970, -0.28449672
    %v1987 = vadd.f32 %v1971, -0.28449672
    %v1988 = vadd.f32 %v1972, -0.28449672
    %v1989 = vadd.f32 %v1973, -0.28449672
    %v1990 = vadd.f32 %v1974, -0.28449672
    %v1991 = vadd.f32 %v1975, -0.28449672
    %v1992 = vadd.f32 %v1976, -0.28449672
    %v1993 = vadd.f32 %v1977, -0.28449672
    %v1994 = vadd.f32 %v1978, -0.28449672
    %v1995 = vadd.f32 %v1979, -0.28449672
    %v1996 = vadd.f32 %v1980, -0.28449672
    %v1997 = vadd.f32 %v1981, -0.28449672
    %v1998 = vadd.f32 %v1982, -0.28449672
    %v1999 = vadd.f32 %v1983, -0.28449672
    %v2000 = vadd.f32 %v1984, -0.28449672
    %v2001 = vmul.f32 %v1985, %v1889
    %v2002 = vmul.f32 %v1986, %v1890
    %v2003 = vmul.f32 %v1987, %v1891
    %v2004 = vmul.f32 %v1988, %v1892
    %v2005 = vmul.f32 %v1989, %v1893
    %v2006 = vmul.f32 %v1990, %v1894
    %v2007 = vmul.f32 %v1991, %v1895
    %v2008 = vmul.f32 %v1992, %v1896
    %v2009 = vmul.f32 %v1993, %v1897
    %v2010 = vmul.f32 %v1994, %v1898
    %v2011 = vmul.f32 %v1995, %v1899
    %v2012 = vmul.f32 %v1996, %v1900
    %v2013 = vmul.f32 %v1997, %v1901
    %v2014 = vmul.f32 %v1998, %v1902
    %v2015 = vmul.f32 %v1999, %v1903
    %v2016 = vmul.f32 %v2000, %v1904
    %v2017 = vadd.f32 %v2001, 0.2548296
    %v2018 = vadd.f32 %v2002, 0.2548296
    %v2019 = vadd.f32 %v2003, 0.2548296
    %v2020 = vadd.f32 %v2004, 0.2548296
    %v2021 = vadd.f32 %v2005, 0.2548296
    %v2022 = vadd.f32 %v2006, 0.2548296
    %v2023 = vadd.f32 %v2007, 0.2548296
    %v2024 = vadd.f32 %v2008, 0.2548296
    %v2025 = vadd.f32 %v2009, 0.2548296
    %v2026 = vadd.f32 %v2010, 0.2548296
    %v2027 = vadd.f32 %v2011, 0.2548296
    %v2028 = vadd.f32 %v2012, 0.2548296
    %v2029 = vadd.f32 %v2013, 0.2548296
    %v2030 = vadd.f32 %v2014, 0.2548296
    %v2031 = vadd.f32 %v2015, 0.2548296
    %v2032 = vadd.f32 %v2016, 0.2548296
    %v2033 = vmul.f32 %v2017, %v1889
    %v2034 = vmul.f32 %v2018, %v1890
    %v2035 = vmul.f32 %v2019, %v1891
    %v2036 = vmul.f32 %v2020, %v1892
    %v2037 = vmul.f32 %v2021, %v1893
    %v2038 = vmul.f32 %v2022, %v1894
    %v2039 = vmul.f32 %v2023, %v1895
    %v2040 = vmul.f32 %v2024, %v1896
    %v2041 = vmul.f32 %v2025, %v1897
    %v2042 = vmul.f32 %v2026, %v1898
    %v2043 = vmul.f32 %v2027, %v1899
    %v2044 = vmul.f32 %v2028, %v1900
    %v2045 = vmul.f32 %v2029, %v1901
    %v2046 = vmul.f32 %v2030, %v1902
    %v2047 = vmul.f32 %v2031, %v1903
    %v2048 = vmul.f32 %v2032, %v1904
    %v2049 = vsub.f32 0.0, %v1841
    %v2050 = vsub.f32 0.0, %v1842
    %v2051 = vsub.f32 0.0, %v1843
    %v2052 = vsub.f32 0.0, %v1844
    %v2053 = vsub.f32 0.0, %v1845
    %v2054 = vsub.f32 0.0, %v1846
    %v2055 = vsub.f32 0.0, %v1847
    %v2056 = vsub.f32 0.0, %v1848
    %v2057 = vsub.f32 0.0, %v1849
    %v2058 = vsub.f32 0.0, %v1850
    %v2059 = vsub.f32 0.0, %v1851
    %v2060 = vsub.f32 0.0, %v1852
    %v2061 = vsub.f32 0.0, %v1853
    %v2062 = vsub.f32 0.0, %v1854
    %v2063 = vsub.f32 0.0, %v1855
    %v2064 = vsub.f32 0.0, %v1856
    %v2065 = vmul.f32 %v2049, %v1841
    %v2066 = vmul.f32 %v2050, %v1842
    %v2067 = vmul.f32 %v2051, %v1843
    %v2068 = vmul.f32 %v2052, %v1844
    %v2069 = vmul.f32 %v2053, %v1845
    %v2070 = vmul.f32 %v2054, %v1846
    %v2071 = vmul.f32 %v2055, %v1847
    %v2072 = vmul.f32 %v2056, %v1848
    %v2073 = vmul.f32 %v2057, %v1849
    %v2074 = vmul.f32 %v2058, %v1850
    %v2075 = vmul.f32 %v2059, %v1851
    %v2076 = vmul.f32 %v2060, %v1852
    %v2077 = vmul.f32 %v2061, %v1853
    %v2078 = vmul.f32 %v2062, %v1854
    %v2079 = vmul.f32 %v2063, %v1855
    %v2080 = vmul.f32 %v2064, %v1856
    %v2081 = vmul.f32 %v2065, 1.442695
    %v2082 = vpow.pop %v2081
    %v2083 = vmul.f32 %v2066, 1.442695
    %v2084 = vpow.pop %v2083
    %v2085 = vmul.f32 %v2067, 1.442695
    %v2086 = vpow.pop %v2085
    %v2087 = vmul.f32 %v2068, 1.442695
    %v2088 = vpow.pop %v2087
    %v2089 = vmul.f32 %v2069, 1.442695
    %v2090 = vpow.pop %v2089
    %v2091 = vmul.f32 %v2070, 1.442695
    %v2092 = vpow.pop %v2091
    %v2093 = vmul.f32 %v2071, 1.442695
    %v2094 = vpow.pop %v2093
    %v2095 = vmul.f32 %v2072, 1.442695
    %v2096 = vpow.pop %v2095
    %v2097 = vmul.f32 %v2073, 1.442695
    %v2098 = vpow.pop %v2097
    %v2099 = vmul.f32 %v2074, 1.442695
    %v2100 = vpow.pop %v2099
    %v2101 = vmul.f32 %v2075, 1.442695
    %v2102 = vpow.pop %v2101
    %v2103 = vmul.f32 %v2076, 1.442695
    %v2104 = vpow.pop %v2103
    %v2105 = vmul.f32 %v2077, 1.442695
    %v2106 = vpow.pop %v2105
    %v2107 = vmul.f32 %v2078, 1.442695
    %v2108 = vpow.pop %v2107
    %v2109 = vmul.f32 %v2079, 1.442695
    %v2110 = vpow.pop %v2109
    %v2111 = vmul.f32 %v2080, 1.442695
    %v2112 = vpow.pop %v2111
    %v2113 = vmul.f32 %v2033, %v2082
    %v2114 = vmul.f32 %v2034, %v2084
    %v2115 = vmul.f32 %v2035, %v2086
    %v2116 = vmul.f32 %v2036, %v2088
    %v2117 = vmul.f32 %v2037, %v2090
    %v2118 = vmul.f32 %v2038, %v2092
    %v2119 = vmul.f32 %v2039, %v2094
    %v2120 = vmul.f32 %v2040, %v2096
    %v2121 = vmul.f32 %v2041, %v2098
    %v2122 = vmul.f32 %v2042, %v2100
    %v2123 = vmul.f32 %v2043, %v2102
    %v2124 = vmul.f32 %v2044, %v2104
    %v2125 = vmul.f32 %v2045, %v2106
    %v2126 = vmul.f32 %v2046, %v2108
    %v2127 = vmul.f32 %v2047, %v2110
    %v2128 = vmul.f32 %v2048, %v2112
    %v2129 = vsub.f32 1.0, %v2113
    %v2130 = vsub.f32 1.0, %v2114
    %v2131 = vsub.f32 1.0, %v2115
    %v2132 = vsub.f32 1.0, %v2116
    %v2133 = vsub.f32 1.0, %v2117
    %v2134 = vsub.f32 1.0, %v2118
    %v2135 = vsub.f32 1.0, %v2119
    %v2136 = vsub.f32 1.0, %v2120
    %v2137 = vsub.f32 1.0, %v2121
    %v2138 = vsub.f32 1.0, %v2122
    %v2139 = vsub.f32 1.0, %v2123
    %v2140 = vsub.f32 1.0, %v2124
    %v2141 = vsub.f32 1.0, %v2125
    %v2142 = vsub.f32 1.0, %v2126
    %v2143 = vsub.f32 1.0, %v2127
    %v2144 = vsub.f32 1.0, %v2128
    %vm2145 = vcmp.ge.f32.partialorder %v1825, 0.0
    %vm2146 = vcmp.ge.f32.partialorder %v1826, 0.0
    %vm2147 = vcmp.ge.f32.partialorder %v1827, 0.0
    %vm2148 = vcmp.ge.f32.partialorder %v1828, 0.0
    %vm2149 = vcmp.ge.f32.partialorder %v1829, 0.0
    %vm2150 = vcmp.ge.f32.partialorder %v1830, 0.0
    %vm2151 = vcmp.ge.f32.partialorder %v1831, 0.0
    %vm2152 = vcmp.ge.f32.partialorder %v1832, 0.0
    %vm2153 = vcmp.ge.f32.partialorder %v1833, 0.0
    %vm2154 = vcmp.ge.f32.partialorder %v1834, 0.0
    %vm2155 = vcmp.ge.f32.partialorder %v1835, 0.0
    %vm2156 = vcmp.ge.f32.partialorder %v1836, 0.0
    %vm2157 = vcmp.ge.f32.partialorder %v1837, 0.0
    %vm2158 = vcmp.ge.f32.partialorder %v1838, 0.0
    %vm2159 = vcmp.ge.f32.partialorder %v1839, 0.0
    %vm2160 = vcmp.ge.f32.partialorder %v1840, 0.0
    %v2161 = vsub.f32 0.0, %v2129
    %v2162 = vsub.f32 0.0, %v2130
    %v2163 = vsub.f32 0.0, %v2131
    %v2164 = vsub.f32 0.0, %v2132
    %v2165 = vsub.f32 0.0, %v2133
    %v2166 = vsub.f32 0.0, %v2134
    %v2167 = vsub.f32 0.0, %v2135
    %v2168 = vsub.f32 0.0, %v2136
    %v2169 = vsub.f32 0.0, %v2137
    %v2170 = vsub.f32 0.0, %v2138
    %v2171 = vsub.f32 0.0, %v2139
    %v2172 = vsub.f32 0.0, %v2140
    %v2173 = vsub.f32 0.0, %v2141
    %v2174 = vsub.f32 0.0, %v2142
    %v2175 = vsub.f32 0.0, %v2143
    %v2176 = vsub.f32 0.0, %v2144
    %v2177 = vsel %vm2145, %v2129, %v2161
    %v2178 = vsel %vm2146, %v2130, %v2162
    %v2179 = vsel %vm2147, %v2131, %v2163
    %v2180 = vsel %vm2148, %v2132, %v2164
    %v2181 = vsel %vm2149, %v2133, %v2165
    %v2182 = vsel %vm2150, %v2134, %v2166
    %v2183 = vsel %vm2151, %v2135, %v2167
    %v2184 = vsel %vm2152, %v2136, %v2168
    %v2185 = vsel %vm2153, %v2137, %v2169
    %v2186 = vsel %vm2154, %v2138, %v2170
    %v2187 = vsel %vm2155, %v2139, %v2171
    %v2188 = vsel %vm2156, %v2140, %v2172
    %v2189 = vsel %vm2157, %v2141, %v2173
    %v2190 = vsel %vm2158, %v2142, %v2174
    %v2191 = vsel %vm2159, %v2143, %v2175
    %v2192 = vsel %vm2160, %v2144, %v2176
    %v2193 = vadd.f32 %v2177, 1.0
    %v2194 = vadd.f32 %v2178, 1.0
    %v2195 = vadd.f32 %v2179, 1.0
    %v2196 = vadd.f32 %v2180, 1.0
    %v2197 = vadd.f32 %v2181, 1.0
    %v2198 = vadd.f32 %v2182, 1.0
    %v2199 = vadd.f32 %v2183, 1.0
    %v2200 = vadd.f32 %v2184, 1.0
    %v2201 = vadd.f32 %v2185, 1.0
    %v2202 = vadd.f32 %v2186, 1.0
    %v2203 = vadd.f32 %v2187, 1.0
    %v2204 = vadd.f32 %v2188, 1.0
    %v2205 = vadd.f32 %v2189, 1.0
    %v2206 = vadd.f32 %v2190, 1.0
    %v2207 = vadd.f32 %v2191, 1.0
    %v2208 = vadd.f32 %v2192, 1.0
    %v2209 = vmul.f32 %v1809, %v2193
    %v2210 = vmul.f32 %v1810, %v2194
    %v2211 = vmul.f32 %v1811, %v2195
    %v2212 = vmul.f32 %v1812, %v2196
    %v2213 = vmul.f32 %v1813, %v2197
    %v2214 = vmul.f32 %v1814, %v2198
    %v2215 = vmul.f32 %v1815, %v2199
    %v2216 = vmul.f32 %v1816, %v2200
    %v2217 = vmul.f32 %v1817, %v2201
    %v2218 = vmul.f32 %v1818, %v2202
    %v2219 = vmul.f32 %v1819, %v2203
    %v2220 = vmul.f32 %v1820, %v2204
    %v2221 = vmul.f32 %v1821, %v2205
    %v2222 = vmul.f32 %v1822, %v2206
    %v2223 = vmul.f32 %v1823, %v2207
    %v2224 = vmul.f32 %v1824, %v2208
    %v2225 = vld [vmem:[%s9] sm:$0xf]
    %v2226 = vld [vmem:[%s9 + $0x4] sm:$0xf]
    %v2227 = vld [vmem:[%s9 + $0x8] sm:$0xf]
    %v2228 = vld [vmem:[%s9 + $0xc] sm:$0xf]
    %v2229 = vpack.c.bf16 %v2213, %v2209
    %v2230 = vpack.c.bf16 %v2214, %v2210
    %v2231 = vpack.c.bf16 %v2215, %v2211
    %v2232 = vpack.c.bf16 %v2216, %v2212
    %v2233 = vpack.c.bf16 %v2221, %v2217
    %v2234 = vpack.c.bf16 %v2222, %v2218
    %v2235 = vpack.c.bf16 %v2223, %v2219
    %v2236 = vpack.c.bf16 %v2224, %v2220
    %v2241 = vunpack.c.l.b16 %v2225
    %v2242 = vunpack.c.l.b16 %v2226
    %v2243 = vunpack.c.l.b16 %v2227
    %v2244 = vunpack.c.l.b16 %v2228
    %v2245 = vpack.c.b16 %v2242, %v2241
    %v2246 = vpack.c.b16 %v2244, %v2243
    %v2248 = vsel %vm55, %v2245, 0
    %v2251 = vsel %vm55, %v2246, 0
    %2253 = vmatprep.subr.bf16.mxu0 %v2230
    %2254 = vmatpush1.bf16.msra.mxu0 %v2229
    %2255 = vmatprep.subr.bf16.mxu0 %v2234
    %2256 = vmatpush1.bf16.msra.mxu0 %v2233
    %2257 = vmatprep.subr.bf16.mxu0 0
    %2258 = vmatpush1.bf16.msra.mxu0 0
    %2259 = vmatprep.subr.bf16.mxu0 0
    %2260 = vmatpush1.bf16.msra.mxu0 0
    %2261 = vmatprep.subr.bf16.mxu0 0
    %2262 = vmatpush1.bf16.msra.mxu0 0
    %2263 = vmatprep.subr.bf16.mxu0 0
    %2264 = vmatpush1.bf16.msra.mxu0 0
    %2265 = vmatprep.subr.bf16.mxu0 0
    %2266 = vmatpush1.bf16.msra.mxu0 0
    %2267 = vmatprep.subr.bf16.mxu0 0
    %2268 = vmatpush1.bf16.msra.mxu0 0
    %2269 = vmatprep.subr.bf16.mxu0 0
    %2270 = vmatpush1.bf16.msra.mxu0 0
    %2271 = vmatprep.subr.bf16.mxu0 0
    %2272 = vmatpush1.bf16.msra.mxu0 0
    %2273 = vmatprep.subr.bf16.mxu0 0
    %2274 = vmatpush1.bf16.msra.mxu0 0
    %2275 = vmatprep.subr.bf16.mxu0 0
    %2276 = vmatpush1.bf16.msra.mxu0 0
    %2277 = vmatprep.subr.bf16.mxu0 0
    %2278 = vmatpush1.bf16.msra.mxu0 0
    %2279 = vmatprep.subr.bf16.mxu0 0
    %2280 = vmatpush1.bf16.msra.mxu0 0
    %2281 = vmatprep.subr.bf16.mxu0 0
    %2282 = vmatpush1.bf16.msra.mxu0 0
    %2283 = vmatprep.subr.bf16.mxu0 0
    %2284 = vmatpush1.bf16.msra.mxu0 0
    %2285 = vmatprep.mubr.bf16.mxu0 0
    %2286 = vmatmul.mubr.bf16.gmra.mrb[0].mxu0 %v2248
    %v2287 = vpop.f32.mrb[0].mxu0
    %v2288 = vadd.f32 0.0, %v2287
    %v2289 = vpop.f32.mrb[0].mxu0
    %v2290 = vadd.f32 0.0, %v2289
    %v2291 = vpop.f32.mrb[0].mxu0
    %v2292 = vadd.f32 0.0, %v2291
    %v2293 = vpop.f32.mrb[0].mxu0
    %v2294 = vadd.f32 0.0, %v2293
    %2295 = vmatprep.mubr.bf16.mxu0 0
    %2296 = vmatmul.mubr.bf16.gmra.mrb[0].mxu0 %v2251
    %v2297 = vpop.f32.mrb[0].mxu0
    %v2298 = vadd.f32 0.0, %v2297
    %v2299 = vpop.f32.mrb[0].mxu0
    %v2300 = vadd.f32 0.0, %v2299
    %v2301 = vpop.f32.mrb[0].mxu0
    %v2302 = vadd.f32 0.0, %v2301
    %v2303 = vpop.f32.mrb[0].mxu0
    %v2304 = vadd.f32 0.0, %v2303
    %2305 = vdwg.mxu0
    %2306 = vmatprep.subr.bf16.mxu0 %v2232
    %2307 = vmatpush1.bf16.msra.mxu0 %v2231
    %2308 = vmatprep.subr.bf16.mxu0 %v2236
    %2309 = vmatpush1.bf16.msra.mxu0 %v2235
    %2310 = vmatprep.subr.bf16.mxu0 0
    %2311 = vmatpush1.bf16.msra.mxu0 0
    %2312 = vmatprep.subr.bf16.mxu0 0
    %2313 = vmatpush1.bf16.msra.mxu0 0
    %2314 = vmatprep.subr.bf16.mxu0 0
    %2315 = vmatpush1.bf16.msra.mxu0 0
    %2316 = vmatprep.subr.bf16.mxu0 0
    %2317 = vmatpush1.bf16.msra.mxu0 0
    %2318 = vmatprep.subr.bf16.mxu0 0
    %2319 = vmatpush1.bf16.msra.mxu0 0
    %2320 = vmatprep.subr.bf16.mxu0 0
    %2321 = vmatpush1.bf16.msra.mxu0 0
    %2322 = vmatprep.subr.bf16.mxu0 0
    %2323 = vmatpush1.bf16.msra.mxu0 0
    %2324 = vmatprep.subr.bf16.mxu0 0
    %2325 = vmatpush1.bf16.msra.mxu0 0
    %2326 = vmatprep.subr.bf16.mxu0 0
    %2327 = vmatpush1.bf16.msra.mxu0 0
    %2328 = vmatprep.subr.bf16.mxu0 0
    %2329 = vmatpush1.bf16.msra.mxu0 0
    %2330 = vmatprep.subr.bf16.mxu0 0
    %2331 = vmatpush1.bf16.msra.mxu0 0
    %2332 = vmatprep.subr.bf16.mxu0 0
    %2333 = vmatpush1.bf16.msra.mxu0 0
    %2334 = vmatprep.subr.bf16.mxu0 0
    %2335 = vmatpush1.bf16.msra.mxu0 0
    %2336 = vmatprep.subr.bf16.mxu0 0
    %2337 = vmatpush1.bf16.msra.mxu0 0
    %2338 = vmatprep.mubr.bf16.mxu0 0
    %2339 = vmatmul.mubr.bf16.gmra.mrb[0].mxu0 %v2248
    %v2340 = vpop.f32.mrb[0].mxu0
    %v2341 = vadd.f32 0.0, %v2340
    %v2342 = vpop.f32.mrb[0].mxu0
    %v2343 = vadd.f32 0.0, %v2342
    %v2344 = vpop.f32.mrb[0].mxu0
    %v2345 = vadd.f32 0.0, %v2344
    %v2346 = vpop.f32.mrb[0].mxu0
    %v2347 = vadd.f32 0.0, %v2346
    %2348 = vmatprep.mubr.bf16.mxu0 0
    %2349 = vmatmul.mubr.bf16.gmra.mrb[0].mxu0 %v2251
    %v2350 = vpop.f32.mrb[0].mxu0
    %v2351 = vadd.f32 0.0, %v2350
    %v2352 = vpop.f32.mrb[0].mxu0
    %v2353 = vadd.f32 0.0, %v2352
    %v2354 = vpop.f32.mrb[0].mxu0
    %v2355 = vadd.f32 0.0, %v2354
    %v2356 = vpop.f32.mrb[0].mxu0
    %v2357 = vadd.f32 0.0, %v2356
    %2358 = vdwg.mxu0
    %v2359 = vadd.f32 %v1678, %v2288
    %v2360 = vadd.f32 %v1680, %v2290
    %v2361 = vadd.f32 %v1751, %v2341
    %v2362 = vadd.f32 %v1753, %v2343
    %v2363 = vadd.f32 %v1682, %v2292
    %v2364 = vadd.f32 %v1684, %v2294
    %v2365 = vadd.f32 %v1755, %v2345
    %v2366 = vadd.f32 %v1757, %v2347
    %v2367 = vadd.f32 %v1688, %v2298
    %v2368 = vadd.f32 %v1690, %v2300
    %v2369 = vadd.f32 %v1761, %v2351
    %v2370 = vadd.f32 %v1763, %v2353
    %v2371 = vadd.f32 %v1692, %v2302
    %v2372 = vadd.f32 %v1694, %v2304
    %v2373 = vadd.f32 %v1765, %v2355
    %v2374 = vadd.f32 %v1767, %v2357
    %v2375 = vld [vmem:[%s10] sm:$0xff]
    %v2376 = vld [vmem:[%s10 + $0x8] sm:$0xff]
    %v2377 = vld [vmem:[%s10 + $0x10] sm:$0xff]
    %v2378 = vld [vmem:[%s10 + $0x18] sm:$0xff]
    %2380 = vset.pattern.permute.xlu0 0
    %2381 = vperm.xlu0 %2380, %v2375
    %v2382 = vpop.permute.xlu0 %2381
    %2385 = vset.pattern.permute.xlu0 0
    %2386 = vperm.xlu0 %2385, %v2376
    %v2387 = vpop.permute.xlu0 %2386
    %2390 = vset.pattern.permute.xlu0 0
    %2391 = vperm.xlu0 %2390, %v2377
    %v2392 = vpop.permute.xlu0 %2391
    %2395 = vset.pattern.permute.xlu0 0
    %2396 = vperm.xlu0 %2395, %v2378
    %v2397 = vpop.permute.xlu0 %2396
    %v2399 = vadd.f32 %v2359, %v2382
    %v2400 = vadd.f32 %v2360, %v2382
    %v2401 = vadd.f32 %v2361, %v2382
    %v2402 = vadd.f32 %v2362, %v2382
    %v2403 = vadd.f32 %v2363, %v2387
    %v2404 = vadd.f32 %v2364, %v2387
    %v2405 = vadd.f32 %v2365, %v2387
    %v2406 = vadd.f32 %v2366, %v2387
    %v2407 = vadd.f32 %v2367, %v2392
    %v2408 = vadd.f32 %v2368, %v2392
    %v2409 = vadd.f32 %v2369, %v2392
    %v2410 = vadd.f32 %v2370, %v2392
    %v2411 = vadd.f32 %v2371, %v2397
    %v2412 = vadd.f32 %v2372, %v2397
    %v2413 = vadd.f32 %v2373, %v2397
    %v2414 = vadd.f32 %v2374, %v2397
    %v2415 = vld [vmem:[%s1] sm:$0xff]
    %v2416 = vld [vmem:[%s1 + $0x8] sm:$0xff]
    %v2417 = vld [vmem:[%s1 + $0x10] sm:$0xff]
    %v2418 = vld [vmem:[%s1 + $0x18] sm:$0xff]
    %v2419 = vld [vmem:[%s1 + $0x20] sm:$0xff]
    %v2420 = vld [vmem:[%s1 + $0x28] sm:$0xff]
    %v2421 = vld [vmem:[%s1 + $0x30] sm:$0xff]
    %v2422 = vld [vmem:[%s1 + $0x38] sm:$0xff]
    %v2423 = vld [vmem:[%s1 + $0x40] sm:$0xff]
    %v2424 = vld [vmem:[%s1 + $0x48] sm:$0xff]
    %v2425 = vld [vmem:[%s1 + $0x50] sm:$0xff]
    %v2426 = vld [vmem:[%s1 + $0x58] sm:$0xff]
    %v2427 = vld [vmem:[%s1 + $0x60] sm:$0xff]
    %v2428 = vld [vmem:[%s1 + $0x68] sm:$0xff]
    %v2429 = vld [vmem:[%s1 + $0x70] sm:$0xff]
    %v2430 = vld [vmem:[%s1 + $0x78] sm:$0xff]
    %v2431 = vadd.f32 %v2399, %v2415
    %v2432 = vadd.f32 %v2400, %v2416
    %v2433 = vadd.f32 %v2401, %v2417
    %v2434 = vadd.f32 %v2402, %v2418
    %v2435 = vadd.f32 %v2403, %v2419
    %v2436 = vadd.f32 %v2404, %v2420
    %v2437 = vadd.f32 %v2405, %v2421
    %v2438 = vadd.f32 %v2406, %v2422
    %v2439 = vadd.f32 %v2407, %v2423
    %v2440 = vadd.f32 %v2408, %v2424
    %v2441 = vadd.f32 %v2409, %v2425
    %v2442 = vadd.f32 %v2410, %v2426
    %v2443 = vadd.f32 %v2411, %v2427
    %v2444 = vadd.f32 %v2412, %v2428
    %v2445 = vadd.f32 %v2413, %v2429
    %v2446 = vadd.f32 %v2414, %v2430
    %2447 = vst [vmem:[#allocation3] sm:$0xff] %v2431
    %2448 = vst [vmem:[#allocation3 + $0x8] sm:$0xff] %v2432
    %2449 = vst [vmem:[#allocation3 + $0x10] sm:$0xff] %v2433
    %2450 = vst [vmem:[#allocation3 + $0x18] sm:$0xff] %v2434
    %2451 = vst [vmem:[#allocation3 + $0x20] sm:$0xff] %v2435
    %2452 = vst [vmem:[#allocation3 + $0x28] sm:$0xff] %v2436
    %2453 = vst [vmem:[#allocation3 + $0x30] sm:$0xff] %v2437
    %2454 = vst [vmem:[#allocation3 + $0x38] sm:$0xff] %v2438
    %2455 = vst [vmem:[#allocation3 + $0x40] sm:$0xff] %v2439
    %2456 = vst [vmem:[#allocation3 + $0x48] sm:$0xff] %v2440
    %2457 = vst [vmem:[#allocation3 + $0x50] sm:$0xff] %v2441
    %2458 = vst [vmem:[#allocation3 + $0x58] sm:$0xff] %v2442
    %2459 = vst [vmem:[#allocation3 + $0x60] sm:$0xff] %v2443
    %2460 = vst [vmem:[#allocation3 + $0x68] sm:$0xff] %v2444
    %2461 = vst [vmem:[#allocation3 + $0x70] sm:$0xff] %v2445
    %2462 = vst [vmem:[#allocation3 + $0x78] sm:$0xff] %v2446
    // Predicated region
    $region46: #{tpu_custom_call.1} parent=1 // pred_check
      _
    $region47: #{tpu_custom_call.1} parent=1 // pred_check_branch
      %2464 = sbr.rel (0) target = $region49
    $region48: #{tpu_custom_call.1} parent=1 // pred_region
      %s2466 = ssub.s32 2048, 2048
      %2467 = vsyncadd [#allocation4], %s2466
      %s2468 = sshll.u32 [#allocation3], 4
      %s2469 = int_to_ptr.vmem [resolvable:$true] %s2468
      %2474 = dma.vmem_to_hbm [thread:$0]  %s2469, 2048, %s11, [#allocation4], 512, 512, 32
    $region49: #{tpu_custom_call.1} parent=1 // pred_fallthru
      _
    // Predicated region
    $region50: #{tpu_custom_call.1} parent=1 // pred_check
      _
    $region51: #{tpu_custom_call.1} parent=1 // pred_check_branch
      %2476 = sbr.rel (0) target = $region53
    $region52: #{tpu_custom_call.1} parent=1 // pred_region
      %2477 = dma.done [#allocation4], 2048
    $region53: #{tpu_custom_call.1} parent=1 // pred_fallthru
      _
    %2478 = vsyncpa [#allocation4], 1

</llo_original>
